<compile_context>
chip_gen: v7x
topology: tpu7x:2x2x1
jax: 0.10.0
libtpu: 0.0.40
codegen_flags: <defaults>
</compile_context>

<pallas_src>
import math
from functools import partial

import jax
import jax.numpy as jnp
from jax import lax
from jax.experimental import pallas as pl
from jax.experimental.pallas import tpu as pltpu


def _round_up(x, m):
    return ((x + m - 1) // m) * m


def _atom_encoder_kernel(xt_ref, table_ref, out_ref, *, cat_dims, num_scalar):
    """Encode one tile of atoms.

    xt_ref:    (num_feat, tile_n) f32  -- x^T block (category-code rows first,
                                          then scalar-feature rows)
    table_ref: (K, emb_dim) f32        -- [stacked emb tables | W_lin | bias | pad]
    out_ref:   (tile_n, emb_dim)
    """
    num_cat = len(cat_dims)
    total_vocab = sum(cat_dims)
    K = table_ref.shape[0]
    tile_n = xt_ref.shape[1]

    xt = xt_ref[...]
    row_iota = lax.broadcasted_iota(jnp.int32, (K, tile_n), 0)  # sublane iota

    # Multi-hot over the stacked-table rows.  Offset ranges are disjoint, so
    # OR the per-feature one-hot compares and convert to f32 once at the end.
    # Codes are clipped per-feature (torch's nn.Embedding would raise on OOB;
    # here OOB / garbage tail columns clamp instead of crossing tables).
    mh = None
    off = 0
    for i, dim in enumerate(cat_dims):
        code = jnp.clip(xt[i:i + 1, :].astype(jnp.int32), 0, dim - 1) + off
        eq = row_iota == code                       # (K, tile_n) bool
        mh = eq if mh is None else (mh | eq)
        off += dim
    lhs = mh.astype(jnp.float32)                    # (K, tile_n)

    # Scalar-feature rows and the all-ones bias row (Linear + bias fused into
    # the same MXU contraction).
    if num_scalar > 0:
        for j in range(num_scalar):
            lhs = jnp.where(row_iota == (total_vocab + j),
                            xt[num_cat + j:num_cat + j + 1, :], lhs)
        lhs = jnp.where(row_iota == (total_vocab + num_scalar),
                        jnp.float32(1.0), lhs)

    # (K, tile_n)^T @ (K, emb_dim) -> (tile_n, emb_dim): lhs-transposed MXU.
    out = lax.dot_general(lhs, table_ref[...],
                          dimension_numbers=(((0,), (0,)), ((), ())),
                          preferred_element_type=jnp.float32,
                          precision=lax.Precision.HIGHEST)
    out_ref[...] = out.astype(out_ref.dtype)


def fuse_atom_encoder_params(tables, w_lin=None, b_lin=None):
    """Stack per-feature embedding tables (+ Linear weight, bias) -> (K, emb_dim)."""
    emb_dim = tables[0].shape[1]
    rows = [t.astype(jnp.float32) for t in tables]
    if w_lin is not None:
        rows.append(w_lin.astype(jnp.float32).reshape(-1, emb_dim))
        rows.append(b_lin.astype(jnp.float32).reshape(1, emb_dim))
    fused = jnp.concatenate(rows, axis=0)
    k_pad = _round_up(fused.shape[0], 8)
    if k_pad != fused.shape[0]:
        fused = jnp.pad(fused, ((0, k_pad - fused.shape[0]), (0, 0)))
    return fused


def atom_encoder_forward(x, fused_table, *, cat_dims, num_scalar,
                         tile_n=1024, out_dtype=jnp.float32):
    """Pallas equivalent of AtomEncoder.forward (lm_embedding_type=None).

    x:           (N, num_cat + num_scalar) -- categorical codes stored as
                 floats in the leading columns, scalar features after.
    fused_table: (K, emb_dim) from fuse_atom_encoder_params.
    returns      (N, emb_dim) in `out_dtype` (use bf16 to halve output HBM
                 traffic on v5e if the precision loss is acceptable).
    """
    n, nf = x.shape
    num_cat = len(cat_dims)
    assert nf == num_cat + num_scalar
    emb_dim = fused_table.shape[1]

    # Lane-dense per-atom layout: features along sublanes, atoms along lanes.
    xt = x.astype(jnp.float32).T                     # (num_feat, n)

    # Tile sizing: lane dim must be a multiple of 128 (or the full extent);
    # keep >= 2 grid steps when N allows so both v7x TensorCores get work.
    if n <= 128:
        tile = n
    else:
        half = (n + 1) // 2
        tile = min(_round_up(tile_n, 128), _round_up(half, 128))
    grid = (pl.cdiv(n, tile),)

    kernel = partial(_atom_encoder_kernel,
                     cat_dims=tuple(int(d) for d in cat_dims),
                     num_scalar=int(num_scalar))

    out = pl.pallas_call(
        kernel,
        out_shape=jax.ShapeDtypeStruct((n, emb_dim), out_dtype),
        grid_spec=pltpu.PrefetchScalarGridSpec(
            num_scalar_prefetch=0,
            grid=grid,
            in_specs=[
                pl.BlockSpec((nf, tile), lambda i: (0, i)),            # x^T block
                pl.BlockSpec(fused_table.shape, lambda i: (0, 0)),     # fused params
            ],
            out_specs=pl.BlockSpec((tile, emb_dim), lambda i: (i, 0)),
        ),
        compiler_params=pltpu.CompilerParams(
            dimension_semantics=("parallel",)),
    )(xt, fused_table)
    return out


if __name__ == "__main__":
    # Small configuration consistent with the module:
    #   feature_dims = ((17, 5, 9), 3), emb_dim = 128, N = 300 atoms
    # (N chosen so the grid has 2 steps and a ragged tail block).
    CAT_DIMS = (17, 5, 9)          # feature_dims[0]
    NUM_SCALAR = 3                 # feature_dims[1]
    EMB_DIM = 128
    N = 300

    key = jax.random.PRNGKey(0)
    k_tab, k_w, k_b, k_idx, k_scal = jax.random.split(key, 5)

    # Per-feature embedding tables (xavier_uniform-style init).
    tables = []
    for i, d in enumerate(CAT_DIMS):
        bound = math.sqrt(6.0 / (d + EMB_DIM))
        tables.append(jax.random.uniform(jax.random.fold_in(k_tab, i),
                                         (d, EMB_DIM), jnp.float32,
                                         minval=-bound, maxval=bound))
    # Linear(num_scalar, emb_dim) parameters.
    lin_bound = 1.0 / math.sqrt(NUM_SCALAR)
    w_lin = jax.random.uniform(k_w, (NUM_SCALAR, EMB_DIM), jnp.float32,
                               minval=-lin_bound, maxval=lin_bound)
    b_lin = jax.random.uniform(k_b, (1, EMB_DIM), jnp.float32,
                               minval=-lin_bound, maxval=lin_bound)

    fused = fuse_atom_encoder_params(tables, w_lin, b_lin)

    # Input x = [categorical codes (as float) | scalar features], like torch.
    cat_codes = jnp.stack(
        [jax.random.randint(jax.random.fold_in(k_idx, i), (N,), 0, d)
         for i, d in enumerate(CAT_DIMS)], axis=1)
    scal_feats = jax.random.uniform(k_scal, (N, NUM_SCALAR), dtype=jnp.float32)
    x = jnp.concatenate([cat_codes.astype(jnp.float32), scal_feats], axis=1)

    out = atom_encoder_forward(x, fused, cat_dims=CAT_DIMS,
                               num_scalar=NUM_SCALAR)
    out = jax.block_until_ready(out)

    # Plain-JAX reference mirroring the torch forward.
    ref = jnp.zeros((N, EMB_DIM), jnp.float32)
    for i in range(len(CAT_DIMS)):
        ref = ref + tables[i][cat_codes[:, i]]
    ref = ref + jnp.dot(scal_feats, w_lin,
                        precision=lax.Precision.HIGHEST) + b_lin

    assert out.shape == (N, EMB_DIM)
    err = float(jnp.max(jnp.abs(out - ref)))
    assert err < 1e-4, err
    print("KERNEL_OK")
</pallas_src>

<mosaic_0001>
module attributes {stable_mosaic.version = 11 : i64} {
  func.func @_atom_encoder_kernel(%arg0: i32, %arg1: memref<6x256xf32, #tpu.memory_space<vmem>>, %arg2: memref<40x128xf32, #tpu.memory_space<vmem>>, %arg3: memref<256x128xf32, #tpu.memory_space<vmem>>) attributes {dimension_semantics = [#tpu.dimension_semantics<parallel>], iteration_bounds = array<i64: 2>, scalar_prefetch = 0 : i64, scratch_operands = 0 : i64, tpu.core_type = #tpu.core_type<tc>, window_params = [{transform_indices = @transform_0, window_bounds = array<i64: 6, 256>}, {pipeline_mode = #tpu.pipeline_mode<synchronous>, transform_indices = @transform_1, window_bounds = array<i64: 40, 128>}, {transform_indices = @transform_2, window_bounds = array<i64: 256, 128>}]} {
    %c0 = arith.constant 0 : index
    %c0_0 = arith.constant 0 : index
    %0 = vector.load %arg1[%c0, %c0_0] : memref<6x256xf32, #tpu.memory_space<vmem>>, vector<6x256xf32>
    %1 = tpu.iota {dimensions = array<i32: 0>} : vector<40x256xi32>
    %2 = vector.extract_strided_slice %0 {offsets = [0, 0], sizes = [1, 256], strides = [1, 1]} : vector<6x256xf32> to vector<1x256xf32>
    %3 = arith.fptosi %2 : vector<1x256xf32> to vector<1x256xi32>
    %c0_i32 = arith.constant 0 : i32
    %c16_i32 = arith.constant 16 : i32
    %4 = vector.broadcast %c0_i32 : i32 to vector<1x256xi32>
    %5 = arith.maxsi %4, %3 : vector<1x256xi32>
    %6 = vector.broadcast %c16_i32 : i32 to vector<1x256xi32>
    %7 = arith.minsi %6, %5 : vector<1x256xi32>
    %c0_i32_1 = arith.constant 0 : i32
    %8 = vector.broadcast %c0_i32_1 : i32 to vector<1x256xi32>
    %9 = arith.addi %7, %8 : vector<1x256xi32>
    %10 = vector.broadcast %9 : vector<1x256xi32> to vector<40x256xi32>
    %11 = arith.cmpi eq, %1, %10 : vector<40x256xi32>
    %12 = vector.extract_strided_slice %0 {offsets = [1, 0], sizes = [1, 256], strides = [1, 1]} : vector<6x256xf32> to vector<1x256xf32>
    %13 = arith.fptosi %12 : vector<1x256xf32> to vector<1x256xi32>
    %c0_i32_2 = arith.constant 0 : i32
    %c4_i32 = arith.constant 4 : i32
    %14 = vector.broadcast %c0_i32_2 : i32 to vector<1x256xi32>
    %15 = arith.maxsi %14, %13 : vector<1x256xi32>
    %16 = vector.broadcast %c4_i32 : i32 to vector<1x256xi32>
    %17 = arith.minsi %16, %15 : vector<1x256xi32>
    %c17_i32 = arith.constant 17 : i32
    %18 = vector.broadcast %c17_i32 : i32 to vector<1x256xi32>
    %19 = arith.addi %17, %18 : vector<1x256xi32>
    %20 = vector.broadcast %19 : vector<1x256xi32> to vector<40x256xi32>
    %21 = arith.cmpi eq, %1, %20 : vector<40x256xi32>
    %22 = arith.ori %11, %21 : vector<40x256xi1>
    %23 = vector.extract_strided_slice %0 {offsets = [2, 0], sizes = [1, 256], strides = [1, 1]} : vector<6x256xf32> to vector<1x256xf32>
    %24 = arith.fptosi %23 : vector<1x256xf32> to vector<1x256xi32>
    %c0_i32_3 = arith.constant 0 : i32
    %c8_i32 = arith.constant 8 : i32
    %25 = vector.broadcast %c0_i32_3 : i32 to vector<1x256xi32>
    %26 = arith.maxsi %25, %24 : vector<1x256xi32>
    %27 = vector.broadcast %c8_i32 : i32 to vector<1x256xi32>
    %28 = arith.minsi %27, %26 : vector<1x256xi32>
    %c22_i32 = arith.constant 22 : i32
    %29 = vector.broadcast %c22_i32 : i32 to vector<1x256xi32>
    %30 = arith.addi %28, %29 : vector<1x256xi32>
    %31 = vector.broadcast %30 : vector<1x256xi32> to vector<40x256xi32>
    %32 = arith.cmpi eq, %1, %31 : vector<40x256xi32>
    %33 = arith.ori %22, %32 : vector<40x256xi1>
    %34 = arith.extui %33 : vector<40x256xi1> to vector<40x256xi32>
    %35 = arith.sitofp %34 : vector<40x256xi32> to vector<40x256xf32>
    %c31_i32 = arith.constant 31 : i32
    %36 = vector.broadcast %c31_i32 : i32 to vector<40x256xi32>
    %37 = arith.cmpi eq, %1, %36 : vector<40x256xi32>
    %38 = vector.extract_strided_slice %0 {offsets = [3, 0], sizes = [1, 256], strides = [1, 1]} : vector<6x256xf32> to vector<1x256xf32>
    %39 = vector.shape_cast %38 : vector<1x256xf32> to vector<1x256xf32>
    %40 = vector.broadcast %39 : vector<1x256xf32> to vector<40x256xf32>
    %41 = arith.select %37, %40, %35 : vector<40x256xi1>, vector<40x256xf32>
    %c32_i32 = arith.constant 32 : i32
    %42 = vector.broadcast %c32_i32 : i32 to vector<40x256xi32>
    %43 = arith.cmpi eq, %1, %42 : vector<40x256xi32>
    %44 = vector.extract_strided_slice %0 {offsets = [4, 0], sizes = [1, 256], strides = [1, 1]} : vector<6x256xf32> to vector<1x256xf32>
    %45 = vector.shape_cast %44 : vector<1x256xf32> to vector<1x256xf32>
    %46 = vector.broadcast %45 : vector<1x256xf32> to vector<40x256xf32>
    %47 = arith.select %43, %46, %41 : vector<40x256xi1>, vector<40x256xf32>
    %c33_i32 = arith.constant 33 : i32
    %48 = vector.broadcast %c33_i32 : i32 to vector<40x256xi32>
    %49 = arith.cmpi eq, %1, %48 : vector<40x256xi32>
    %50 = vector.extract_strided_slice %0 {offsets = [5, 0], sizes = [1, 256], strides = [1, 1]} : vector<6x256xf32> to vector<1x256xf32>
    %51 = vector.shape_cast %50 : vector<1x256xf32> to vector<1x256xf32>
    %52 = vector.broadcast %51 : vector<1x256xf32> to vector<40x256xf32>
    %53 = arith.select %49, %52, %47 : vector<40x256xi1>, vector<40x256xf32>
    %c34_i32 = arith.constant 34 : i32
    %54 = vector.broadcast %c34_i32 : i32 to vector<40x256xi32>
    %55 = arith.cmpi eq, %1, %54 : vector<40x256xi32>
    %cst = arith.constant 1.000000e+00 : f32
    %56 = vector.broadcast %cst : f32 to vector<40x256xf32>
    %57 = arith.select %55, %56, %53 : vector<40x256xi1>, vector<40x256xf32>
    %c0_4 = arith.constant 0 : index
    %c0_5 = arith.constant 0 : index
    %58 = vector.load %arg2[%c0_4, %c0_5] : memref<40x128xf32, #tpu.memory_space<vmem>>, vector<40x128xf32>
    %cst_6 = arith.constant dense<0.000000e+00> : vector<256x128xf32>
    %59 = tpu.matmul %57, %58, %cst_6 {dimension_numbers = #tpu.dot_dimension_numbers<[0], [0], [1], [1], [0, 1, 1, 1], [], []>, precision = #tpu.contract_precision<fp32>} : vector<40x256xf32>, vector<40x128xf32>, vector<256x128xf32> -> vector<256x128xf32>
    %c0_7 = arith.constant 0 : index
    %c0_8 = arith.constant 0 : index
    %60 = vector.load %arg3[%c0_7, %c0_8] : memref<256x128xf32, #tpu.memory_space<vmem>>, vector<256x128xf32>
    tpu.vector_store %arg3[%c0_7, %c0_8], %59 {strides = array<i32>} : memref<256x128xf32, #tpu.memory_space<vmem>>, vector<256x128xf32>,
    return
  }
  func.func @transform_0(%arg0: i32) -> (i32, i32) {
    %c0_i32 = arith.constant 0 : i32
    %c0_i32_0 = arith.constant 0 : i32
    return %c0_i32, %arg0 : i32, i32
  }
  func.func @transform_1(%arg0: i32) -> (i32, i32) {
    %c0_i32 = arith.constant 0 : i32
    %c0_i32_0 = arith.constant 0 : i32
    %c0_i32_1 = arith.constant 0 : i32
    return %c0_i32, %c0_i32_0 : i32, i32
  }
  func.func @transform_2(%arg0: i32) -> (i32, i32) {
    %c0_i32 = arith.constant 0 : i32
    %c0_i32_0 = arith.constant 0 : i32
    return %arg0, %c0_i32 : i32, i32
  }
}

</mosaic_0001>

<llo_original>
// kernel: tpu_custom_call.1
$region0: #{tpu_custom_call.1}
  #allocation0 [shape = 'u32[]', space=smem, size = 0x4, offset = 0x4, fixed_abs, tag = 'smem constant byte address 0x4 - core index']
  #allocation1 [shape = 'u32[144,128]{1,0:T(1,128)}', space=vmem, size = 0x12000, scoped, tag = 'internal scratch']
  %s0 = inlined_call_operand.hbm [shape: f32[6,300], index: 0, kind: input, shape index: {}]
  %s1 = inlined_call_operand.hbm [shape: f32[40,128], index: 1, kind: input, shape index: {}]
  %s2 = inlined_call_operand.hbm [shape: f32[300,128], index: 2, kind: output, shape index: {}]
  %s3 = sld [smem:[#allocation0]]
  $region49: #{tpu_custom_call.1} parent=0
    _
  %s5 = ssub.s32 1, %s3
  %s6 = scalar_select 0, %s5, %s3
  $region1: #{tpu_custom_call.1} parent=0
    #allocation2 [shape = 'u8[16384]{0}', space=vmem, size = 0x4000, scoped, tag = 'input window, operand 0']
    #allocation3 [shape = 's32[2]{0}', space=sflag, size = 0x8, scoped, tag = 'scoped memory for tpu_custom_call.1']
    #allocation4 [shape = 's32[2]{0}', space=sflag, size = 0x8, scoped, tag = 'scoped memory for tpu_custom_call.1']
    #allocation5 [shape = 'u8[20480]{0}', space=vmem, size = 0x5000, scoped, tag = 'input window, operand 1, single buffered']
    #allocation6 [shape = 's32[1]{0}', space=sflag, size = 0x4, scoped, tag = 'scoped memory for tpu_custom_call.1']
    #allocation7 [shape = 'u8[262144]{0}', space=vmem, size = 0x40000, scoped, tag = 'output window, operand 0']
    %7 = vsyncpa [#allocation3], 0
    %s8 = scalar_lea.sflag [#allocation3], 1
    %9 = vsyncpa %s8, 0
    %10 = vsyncpa [#allocation6], 0
    %11 = vsyncpa [#allocation4], 0
    %s12 = scalar_lea.sflag [#allocation4], 1
    %13 = vsyncpa %s12, 0
    loop: start=0, step=1, limit=4
    $region2: #{tpu_custom_call.1} parent=1 // loop_pre_header
      _
    $region3: #{tpu_custom_call.1} parent=1 // loop_header
      %s15 = sphi 0, %s19
      %p16 = scmp.ge.s32.totalorder %s15, 4
      %s25 = sphi 0, %s27
      %s28 = sphi 0, %s25
      %s29 = sphi 0, %s28
      %s45 = sphi 0, %s29
      %s49 = sphi 0, %s49
      %s51 = sphi 0, %s49
      %s52 = sphi 0, %s51
      %s66 = sphi 0, %s52
      %s72 = sphi 0, %s74
      %s75 = sphi 0, %s72
      %s76 = sphi 0, %s75
      %s92 = sphi 0, %s76
    $region4: #{tpu_custom_call.1} parent=1 // loop_header_branch
      %18 = sbr.rel (%p16) target = $region8
    $region5: #{tpu_custom_call.1} parent=1 // loop_body
      %s20 = ssub.s32 %s15, 1
      %s21 = ssub.s32 %s15, 2
      %s22 = sadd.s32 %s15, 1
      %s23 = ssub.s32 %s15, %s22
      %p24 = scmp.eq.s32.totalorder %s23, 0
      %s26 = sadd.s32 %s25, 1
      %s27 = scalar_select %p24, %s25, %s26
      %p30 = pneg %p24
      %p31 = scmp.eq.s32.totalorder %s15, 1
      %p32 = por %p30, %p31
      %p33 = scmp.ne.s32.totalorder %s25, %s28
      %p34 = scmp.eq.s32.totalorder %s15, 0
      %p35 = por %p33, %p34
      %p36 = scmp.ne.s32.totalorder %s25, %s28
      %p37 = scmp.eq.s32.totalorder %s20, 1
      %p38 = por %p36, %p37
      %p39 = scmp.ne.s32.totalorder %s28, %s29
      %p40 = scmp.eq.s32.totalorder %s20, 0
      %p41 = por %p39, %p40
      %p42 = scmp.ne.s32.totalorder %s28, %s29
      %p43 = scmp.eq.s32.totalorder %s21, 1
      %p44 = por %p42, %p43
      %p46 = scmp.ne.s32.totalorder %s29, %s45
      %p47 = scmp.eq.s32.totalorder %s21, 0
      %p48 = por %p46, %p47
      %s50 = sadd.s32 %s49, 1
      %p53 = scmp.eq.s32.totalorder %s15, 1
      %p54 = scmp.ne.s32.totalorder %s49, %s51
      %p55 = scmp.eq.s32.totalorder %s15, 0
      %p56 = por %p54, %p55
      %p57 = scmp.ne.s32.totalorder %s49, %s51
      %p58 = scmp.eq.s32.totalorder %s20, 1
      %p59 = por %p57, %p58
      %p60 = scmp.ne.s32.totalorder %s51, %s52
      %p61 = scmp.eq.s32.totalorder %s20, 0
      %p62 = por %p60, %p61
      %p63 = scmp.ne.s32.totalorder %s51, %s52
      %p64 = scmp.eq.s32.totalorder %s21, 1
      %p65 = por %p63, %p64
      %p67 = scmp.ne.s32.totalorder %s52, %s66
      %p68 = scmp.eq.s32.totalorder %s21, 0
      %p69 = por %p67, %p68
      %s70 = ssub.s32 %s15, %s22
      %p71 = scmp.eq.s32.totalorder %s70, 0
      %s73 = sadd.s32 %s72, 1
      %s74 = scalar_select %p71, %s72, %s73
      %p77 = pneg %p71
      %p78 = scmp.eq.s32.totalorder %s15, 1
      %p79 = por %p77, %p78
      %p80 = scmp.ne.s32.totalorder %s72, %s75
      %p81 = scmp.eq.s32.totalorder %s15, 0
      %p82 = por %p80, %p81
      %p83 = scmp.ne.s32.totalorder %s72, %s75
      %p84 = scmp.eq.s32.totalorder %s20, 1
      %p85 = por %p83, %p84
      %p86 = scmp.ne.s32.totalorder %s75, %s76
      %p87 = scmp.eq.s32.totalorder %s20, 0
      %p88 = por %p86, %p87
      %p89 = scmp.ne.s32.totalorder %s75, %s76
      %p90 = scmp.eq.s32.totalorder %s21, 1
      %p91 = por %p89, %p90
      %p93 = scmp.ne.s32.totalorder %s76, %s92
      %p94 = scmp.eq.s32.totalorder %s21, 0
      %p95 = por %p93, %p94
      %p96 = scmp.le.s32.totalorder 1, %s15
      %p97 = scmp.lt.s32.totalorder %s15, 3
      %p98 = pnand %p96, %p97
      %p99 = pneg %p98
      // Predicated region
      $region9: #{tpu_custom_call.1} parent=5 // pred_check
        _
      $region10: #{tpu_custom_call.1} parent=5 // pred_check_branch
        %101 = sbr.rel (%p98) target = $region12
      $region11: #{tpu_custom_call.1} parent=5 // pred_region
        %s102 = ssub.s32 %s15, 1
        // Predicated region
        $region13: #{tpu_custom_call.1} parent=11 // pred_check
          %p103 = pneg %p62
        $region14: #{tpu_custom_call.1} parent=11 // pred_check_branch
          %105 = sbr.rel (%p103) target = $region16
        $region15: #{tpu_custom_call.1} parent=11 // pred_region
          %s107 = ssub.s32 640, 640
          %108 = vsyncadd [#allocation6], %s107
          %s109 = sshll.u32 [#allocation5], 4
          %s110 = int_to_ptr.vmem [resolvable:$true] %s109
          %115 = dma.hbm_to_vmem [thread:$0]  %s1, 640, %s110, [#allocation6], 128, 128, 8
        $region16: #{tpu_custom_call.1} parent=11 // pred_fallthru
          _
      $region12: #{tpu_custom_call.1} parent=5 // pred_fallthru
        _
      %p116 = scmp.lt.s32.totalorder %s15, 2
      // Predicated region
      $region17: #{tpu_custom_call.1} parent=5 // pred_check
        %p117 = pneg %p116
      $region18: #{tpu_custom_call.1} parent=5 // pred_check_branch
        %119 = sbr.rel (%p117) target = $region20
      $region19: #{tpu_custom_call.1} parent=5 // pred_region
        // Predicated region
        $region21: #{tpu_custom_call.1} parent=19 // pred_check
          %p120 = pneg %p35
        $region22: #{tpu_custom_call.1} parent=19 // pred_check_branch
          %122 = sbr.rel (%p120) target = $region24
        $region23: #{tpu_custom_call.1} parent=19 // pred_region
          %s123 = sand.u32 %s25, 1
          %s124 = scalar_lea.sflag [#allocation3], %s123
          %s125 = sand.u32 %s25, 1
          %s126 = smul.addr %s125, 16
          %s127 = scalar_lea.vmem [#allocation2], %s126
          %s128 = smul.u32 2, %s15
          %s129 = ssub.s32 3, %s128
          %p130 = scmp.lt.s32.totalorder %s129, 2
          %s131 = scalar_select %p130, %s129, 2
          %s132 = smul.u32 128, %s131
          %s134 = ssub.s32 256, %s132
          %135 = vsyncadd %s124, %s134
          %p136 = scmp.ne.s32.totalorder 0, %s132
          %s137 = smul.addr %s128, 128
          %s138 = scalar_lea.hbm %s0, %s137
          %s139 = smul.u32 %s131, 8
          %s140 = sshll.u32 %s139, 4
          %s141 = sshll.u32 %s127, 4
          %s142 = int_to_ptr.vmem [resolvable:$true] %s141
          %144 = dma.hbm_to_vmem [thread:$0]  (%p136), %s138, %s140, %s142, %s124
        $region24: #{tpu_custom_call.1} parent=19 // pred_fallthru
          _
      $region20: #{tpu_custom_call.1} parent=5 // pred_fallthru
        _
      %p145 = scmp.le.s32.totalorder 1, %s15
      %p146 = scmp.lt.s32.totalorder %s15, 3
      %p147 = pnand %p145, %p146
      %p148 = pneg %p147
      // Predicated region
      $region25: #{tpu_custom_call.1} parent=5 // pred_check
        _
      $region26: #{tpu_custom_call.1} parent=5 // pred_check_branch
        %150 = sbr.rel (%p147) target = $region28
      $region27: #{tpu_custom_call.1} parent=5 // pred_region
        %s151 = ssub.s32 %s15, 1
        %s152 = sand.u32 %s28, 1
        %s153 = scalar_lea.sflag [#allocation3], %s152
        %s154 = sand.u32 %s28, 1
        %s155 = smul.addr %s154, 16
        %s156 = scalar_lea.vmem [#allocation2], %s155
        // Predicated region
        $region29: #{tpu_custom_call.1} parent=27 // pred_check
          %p157 = pneg %p41
        $region30: #{tpu_custom_call.1} parent=27 // pred_check_branch
          %159 = sbr.rel (%p157) target = $region32
        $region31: #{tpu_custom_call.1} parent=27 // pred_region
          %160 = dma.done %s153, 256
        $region32: #{tpu_custom_call.1} parent=27 // pred_fallthru
          _
        // Predicated region
        $region33: #{tpu_custom_call.1} parent=27 // pred_check
          %p161 = pneg %p62
        $region34: #{tpu_custom_call.1} parent=27 // pred_check_branch
          %163 = sbr.rel (%p161) target = $region36
        $region35: #{tpu_custom_call.1} parent=27 // pred_region
          %164 = dma.done [#allocation6], 640
        $region36: #{tpu_custom_call.1} parent=27 // pred_fallthru
          _
        %s165 = sand.u32 %s28, 1
        %s166 = scalar_lea.sflag [#allocation3], %s165
        %s167 = sand.u32 %s28, 1
        %s168 = smul.addr %s167, 16
        %s169 = scalar_lea.vmem [#allocation2], %s168
        %p170 = pneg %p41
        %p171 = pneg %p38
        %p172 = pneg %p62
        %p173 = pneg %p59
        %p174 = pneg %p88
        %p175 = pneg %p85
        %s176 = sand.u32 %s75, 1
        %s177 = scalar_lea.sflag [#allocation4], %s176
        %s178 = sand.u32 %s75, 1
        %s179 = smul.addr %s178, 256
        %s180 = scalar_lea.vmem [#allocation7], %s179
        %s181 = smul.u32 2, %s20
        %s182 = ssub.s32 3, %s181
        %p183 = scmp.lt.s32.totalorder %s182, 2
        %s184 = scalar_select %p183, %s182, 2
        %s185 = smul.u32 128, %s184
        %s186 = smul.u32 32, %s20
        %s187 = ssub.s32 38, %s186
        %p188 = scmp.lt.s32.totalorder %s187, 32
        %s189 = scalar_select %p188, %s187, 32
        %s190 = smul.u32 128, %s189
        %v191 = vld [vmem:[%s156] sm:$0x3f]
        %v192 = vld [vmem:[%s156 + $0x8] sm:$0x3f]
        %v193 = vlaneseq
        %v194 = vshrl.u32 %v193, 7
        %v195 = vadd.s32 %v194, 8
        %v196 = vadd.s32 %v194, 16
        %v197 = vadd.s32 %v194, 24
        %v198 = vadd.s32 %v194, 32
        %v199 = vcvt.f32.s32.to.zero.pseudo %v191
        %v200 = vcvt.f32.s32.to.zero.pseudo %v192
        %vm201 = vcmp.gt.s32.totalorder %v199, 0
        %v202 = vsel %vm201, %v199, 0
        %vm203 = vcmp.gt.s32.totalorder %v200, 0
        %v204 = vsel %vm203, %v200, 0
        %vm205 = vcmp.lt.s32.totalorder %v202, 16
        %v206 = vsel %vm205, %v202, 16
        %vm207 = vcmp.lt.s32.totalorder %v204, 16
        %v208 = vsel %vm207, %v204, 16
        %v209 = vlaneseq
        %v210 = vshrl.u32 %v209, 7
        %v211 = vsub.s32 0, %v210
        %v212 = vrot.slane %v206, %v211
        %v213 = vlaneseq
        %v214 = vshrl.u32 %v213, 7
        %v215 = vsub.s32 0, %v214
        %v216 = vrot.slane %v208, %v215
        %vm217 = vcmp.eq.s32.totalorder %v194, %v212
        %vm218 = vcmp.eq.s32.totalorder %v194, %v216
        %vm219 = vcmp.eq.s32.totalorder %v195, %v212
        %vm220 = vcmp.eq.s32.totalorder %v195, %v216
        %vm221 = vcmp.eq.s32.totalorder %v196, %v212
        %vm222 = vcmp.eq.s32.totalorder %v196, %v216
        %vm223 = vcmp.eq.s32.totalorder %v197, %v212
        %vm224 = vcmp.eq.s32.totalorder %v197, %v216
        %vm225 = vcmp.eq.s32.totalorder %v198, %v212
        %vm226 = vcmp.eq.s32.totalorder %v198, %v216
        %vm227 = vcmp.lt.s32.totalorder %v202, 4
        %v228 = vsel %vm227, %v202, 4
        %vm229 = vcmp.lt.s32.totalorder %v204, 4
        %v230 = vsel %vm229, %v204, 4
        %v231 = vadd.s32 %v228, 17
        %v232 = vadd.s32 %v230, 17
        %v233 = vlaneseq
        %v234 = vshrl.u32 %v233, 7
        %v235 = vsub.s32 1, %v234
        %v236 = vrot.slane %v231, %v235
        %v237 = vlaneseq
        %v238 = vshrl.u32 %v237, 7
        %v239 = vsub.s32 1, %v238
        %v240 = vrot.slane %v232, %v239
        %vm241 = vcmp.eq.s32.totalorder %v194, %v236
        %vm242 = vcmp.eq.s32.totalorder %v194, %v240
        %vm243 = vcmp.eq.s32.totalorder %v195, %v236
        %vm244 = vcmp.eq.s32.totalorder %v195, %v240
        %vm245 = vcmp.eq.s32.totalorder %v196, %v236
        %vm246 = vcmp.eq.s32.totalorder %v196, %v240
        %vm247 = vcmp.eq.s32.totalorder %v197, %v236
        %vm248 = vcmp.eq.s32.totalorder %v197, %v240
        %vm249 = vcmp.eq.s32.totalorder %v198, %v236
        %vm250 = vcmp.eq.s32.totalorder %v198, %v240
        %vm251 = vmor %vm217, %vm241
        %vm252 = vmor %vm218, %vm242
        %vm253 = vmor %vm219, %vm243
        %vm254 = vmor %vm220, %vm244
        %vm255 = vmor %vm221, %vm245
        %vm256 = vmor %vm222, %vm246
        %vm257 = vmor %vm223, %vm247
        %vm258 = vmor %vm224, %vm248
        %vm259 = vmor %vm225, %vm249
        %vm260 = vmor %vm226, %vm250
        %vm261 = vcmp.lt.s32.totalorder %v202, 8
        %v262 = vsel %vm261, %v202, 8
        %vm263 = vcmp.lt.s32.totalorder %v204, 8
        %v264 = vsel %vm263, %v204, 8
        %v265 = vadd.s32 %v262, 22
        %v266 = vadd.s32 %v264, 22
        %v267 = vlaneseq
        %v268 = vshrl.u32 %v267, 7
        %v269 = vsub.s32 2, %v268
        %v270 = vrot.slane %v265, %v269
        %v271 = vlaneseq
        %v272 = vshrl.u32 %v271, 7
        %v273 = vsub.s32 2, %v272
        %v274 = vrot.slane %v266, %v273
        %vm275 = vcmp.eq.s32.totalorder %v194, %v270
        %vm276 = vcmp.eq.s32.totalorder %v194, %v274
        %vm277 = vcmp.eq.s32.totalorder %v195, %v270
        %vm278 = vcmp.eq.s32.totalorder %v195, %v274
        %vm279 = vcmp.eq.s32.totalorder %v196, %v270
        %vm280 = vcmp.eq.s32.totalorder %v196, %v274
        %vm281 = vcmp.eq.s32.totalorder %v197, %v270
        %vm282 = vcmp.eq.s32.totalorder %v197, %v274
        %vm283 = vcmp.eq.s32.totalorder %v198, %v270
        %vm284 = vcmp.eq.s32.totalorder %v198, %v274
        %vm285 = vmor %vm251, %vm275
        %vm286 = vmor %vm252, %vm276
        %vm287 = vmor %vm253, %vm277
        %vm288 = vmor %vm254, %vm278
        %vm289 = vmor %vm255, %vm279
        %vm290 = vmor %vm256, %vm280
        %vm291 = vmor %vm257, %vm281
        %vm292 = vmor %vm258, %vm282
        %vm293 = vmor %vm259, %vm283
        %vm294 = vmor %vm260, %vm284
        %v295 = vsel %vm285, 1, 0
        %v296 = vsel %vm286, 1, 0
        %v297 = vsel %vm287, 1, 0
        %v298 = vsel %vm288, 1, 0
        %v299 = vsel %vm289, 1, 0
        %v300 = vsel %vm290, 1, 0
        %v301 = vsel %vm291, 1, 0
        %v302 = vsel %vm292, 1, 0
        %v303 = vsel %vm293, 1, 0
        %v304 = vsel %vm294, 1, 0
        %v305 = vcvt.s32.f32 %v295
        %v306 = vcvt.s32.f32 %v296
        %v307 = vcvt.s32.f32 %v297
        %v308 = vcvt.s32.f32 %v298
        %v309 = vcvt.s32.f32 %v299
        %v310 = vcvt.s32.f32 %v300
        %v311 = vcvt.s32.f32 %v301
        %v312 = vcvt.s32.f32 %v302
        %v313 = vcvt.s32.f32 %v303
        %v314 = vcvt.s32.f32 %v304
        %vm315 = vcmp.eq.s32.totalorder %v194, 31
        %vm316 = vcmp.eq.s32.totalorder %v195, 31
        %vm317 = vcmp.eq.s32.totalorder %v196, 31
        %vm318 = vcmp.eq.s32.totalorder %v197, 31
        %vm319 = vcmp.eq.s32.totalorder %v198, 31
        %v320 = vlaneseq
        %v321 = vshrl.u32 %v320, 7
        %v322 = vsub.s32 3, %v321
        %v323 = vrot.slane %v191, %v322
        %v324 = vlaneseq
        %v325 = vshrl.u32 %v324, 7
        %v326 = vsub.s32 3, %v325
        %v327 = vrot.slane %v192, %v326
        %v328 = vsel %vm315, %v323, %v305
        %v329 = vsel %vm315, %v327, %v306
        %v330 = vsel %vm316, %v323, %v307
        %v331 = vsel %vm316, %v327, %v308
        %v332 = vsel %vm317, %v323, %v309
        %v333 = vsel %vm317, %v327, %v310
        %v334 = vsel %vm318, %v323, %v311
        %v335 = vsel %vm318, %v327, %v312
        %v336 = vsel %vm319, %v323, %v313
        %v337 = vsel %vm319, %v327, %v314
        %vm338 = vcmp.eq.s32.totalorder %v194, 32
        %vm339 = vcmp.eq.s32.totalorder %v195, 32
        %vm340 = vcmp.eq.s32.totalorder %v196, 32
        %vm341 = vcmp.eq.s32.totalorder %v197, 32
        %vm342 = vcmp.eq.s32.totalorder %v198, 32
        %v343 = vlaneseq
        %v344 = vshrl.u32 %v343, 7
        %v345 = vsub.s32 4, %v344
        %v346 = vrot.slane %v191, %v345
        %v347 = vlaneseq
        %v348 = vshrl.u32 %v347, 7
        %v349 = vsub.s32 4, %v348
        %v350 = vrot.slane %v192, %v349
        %v351 = vsel %vm338, %v346, %v328
        %v352 = vsel %vm338, %v350, %v329
        %v353 = vsel %vm339, %v346, %v330
        %v354 = vsel %vm339, %v350, %v331
        %v355 = vsel %vm340, %v346, %v332
        %v356 = vsel %vm340, %v350, %v333
        %v357 = vsel %vm341, %v346, %v334
        %v358 = vsel %vm341, %v350, %v335
        %v359 = vsel %vm342, %v346, %v336
        %v360 = vsel %vm342, %v350, %v337
        %vm361 = vcmp.eq.s32.totalorder %v194, 33
        %vm362 = vcmp.eq.s32.totalorder %v195, 33
        %vm363 = vcmp.eq.s32.totalorder %v196, 33
        %vm364 = vcmp.eq.s32.totalorder %v197, 33
        %vm365 = vcmp.eq.s32.totalorder %v198, 33
        %v366 = vlaneseq
        %v367 = vshrl.u32 %v366, 7
        %v368 = vsub.s32 5, %v367
        %v369 = vrot.slane %v191, %v368
        %v370 = vlaneseq
        %v371 = vshrl.u32 %v370, 7
        %v372 = vsub.s32 5, %v371
        %v373 = vrot.slane %v192, %v372
        %v374 = vsel %vm361, %v369, %v351
        %v375 = vsel %vm361, %v373, %v352
        %v376 = vsel %vm362, %v369, %v353
        %v377 = vsel %vm362, %v373, %v354
        %v378 = vsel %vm363, %v369, %v355
        %v379 = vsel %vm363, %v373, %v356
        %v380 = vsel %vm364, %v369, %v357
        %v381 = vsel %vm364, %v373, %v358
        %v382 = vsel %vm365, %v369, %v359
        %v383 = vsel %vm365, %v373, %v360
        %vm384 = vcmp.eq.s32.totalorder %v194, 34
        %vm385 = vcmp.eq.s32.totalorder %v195, 34
        %vm386 = vcmp.eq.s32.totalorder %v196, 34
        %vm387 = vcmp.eq.s32.totalorder %v197, 34
        %vm388 = vcmp.eq.s32.totalorder %v198, 34
        %v389 = vsel %vm384, 1.0, %v374
        %v390 = vsel %vm384, 1.0, %v375
        %v391 = vsel %vm385, 1.0, %v376
        %v392 = vsel %vm385, 1.0, %v377
        %v393 = vsel %vm386, 1.0, %v378
        %v394 = vsel %vm386, 1.0, %v379
        %v395 = vsel %vm387, 1.0, %v380
        %v396 = vsel %vm387, 1.0, %v381
        %v397 = vsel %vm388, 1.0, %v382
        %v398 = vsel %vm388, 1.0, %v383
        %v399 = vld [vmem:[#allocation5] sm:$0xff]
        %v400 = vld [vmem:[#allocation5 + $0x8] sm:$0xff]
        %v401 = vld [vmem:[#allocation5 + $0x10] sm:$0xff]
        %v402 = vld [vmem:[#allocation5 + $0x18] sm:$0xff]
        %v403 = vld [vmem:[#allocation5 + $0x20] sm:$0xff]
        %404 = vxpose.xlu0.b32.start [1/16] %v389, 128
        %405 = vxpose.xlu0.b32.cont [2/16] %v391, 128
        %406 = vxpose.xlu0.b32.cont [3/16] %v393, 128
        %407 = vxpose.xlu0.b32.cont [4/16] %v395, 128
        %408 = vxpose.xlu0.b32.cont [5/16] %v397, 128
        %409 = vxpose.xlu0.b32.cont [6/16] 0.0, 128
        %410 = vxpose.xlu0.b32.cont [7/16] 0.0, 128
        %411 = vxpose.xlu0.b32.cont [8/16] 0.0, 128
        %412 = vxpose.xlu0.b32.cont [9/16] 0.0, 128
        %413 = vxpose.xlu0.b32.cont [10/16] 0.0, 128
        %414 = vxpose.xlu0.b32.cont [11/16] 0.0, 128
        %415 = vxpose.xlu0.b32.cont [12/16] 0.0, 128
        %416 = vxpose.xlu0.b32.cont [13/16] 0.0, 128
        %417 = vxpose.xlu0.b32.cont [14/16] 0.0, 128
        %418 = vxpose.xlu0.b32.cont [15/16] 0.0, 128
        %419 = vxpose.xlu0.b32.end [16/16] 0.0, 128
        %v420 = vpop.trf.xlu0
        %v421 = vpop.trf.xlu0
        %v422 = vpop.trf.xlu0
        %v423 = vpop.trf.xlu0
        %v424 = vpop.trf.xlu0
        %v425 = vpop.trf.xlu0
        %v426 = vpop.trf.xlu0
        %v427 = vpop.trf.xlu0
        %v428 = vpop.trf.xlu0
        %v429 = vpop.trf.xlu0
        %v430 = vpop.trf.xlu0
        %v431 = vpop.trf.xlu0
        %v432 = vpop.trf.xlu0
        %v433 = vpop.trf.xlu0
        %v434 = vpop.trf.xlu0
        %v435 = vpop.trf.xlu0
        %436 = vxpose.xlu0.b32.start [1/16] %v390, 128
        %437 = vxpose.xlu0.b32.cont [2/16] %v392, 128
        %438 = vxpose.xlu0.b32.cont [3/16] %v394, 128
        %439 = vxpose.xlu0.b32.cont [4/16] %v396, 128
        %440 = vxpose.xlu0.b32.cont [5/16] %v398, 128
        %441 = vxpose.xlu0.b32.cont [6/16] 0.0, 128
        %442 = vxpose.xlu0.b32.cont [7/16] 0.0, 128
        %443 = vxpose.xlu0.b32.cont [8/16] 0.0, 128
        %444 = vxpose.xlu0.b32.cont [9/16] 0.0, 128
        %445 = vxpose.xlu0.b32.cont [10/16] 0.0, 128
        %446 = vxpose.xlu0.b32.cont [11/16] 0.0, 128
        %447 = vxpose.xlu0.b32.cont [12/16] 0.0, 128
        %448 = vxpose.xlu0.b32.cont [13/16] 0.0, 128
        %449 = vxpose.xlu0.b32.cont [14/16] 0.0, 128
        %450 = vxpose.xlu0.b32.cont [15/16] 0.0, 128
        %451 = vxpose.xlu0.b32.end [16/16] 0.0, 128
        %v452 = vpop.trf.xlu0
        %v453 = vpop.trf.xlu0
        %v454 = vpop.trf.xlu0
        %v455 = vpop.trf.xlu0
        %v456 = vpop.trf.xlu0
        %v457 = vpop.trf.xlu0
        %v458 = vpop.trf.xlu0
        %v459 = vpop.trf.xlu0
        %v460 = vpop.trf.xlu0
        %v461 = vpop.trf.xlu0
        %v462 = vpop.trf.xlu0
        %v463 = vpop.trf.xlu0
        %v464 = vpop.trf.xlu0
        %v465 = vpop.trf.xlu0
        %v466 = vpop.trf.xlu0
        %v467 = vpop.trf.xlu0
        %vm468 = vcmask 326656
        %v470 = vsel %vm468, %v420, 0
        %v473 = vsel %vm468, %v421, 0
        %v476 = vsel %vm468, %v422, 0
        %v479 = vsel %vm468, %v423, 0
        %v482 = vsel %vm468, %v424, 0
        %v485 = vsel %vm468, %v425, 0
        %v488 = vsel %vm468, %v426, 0
        %v491 = vsel %vm468, %v427, 0
        %v494 = vsel %vm468, %v428, 0
        %v497 = vsel %vm468, %v429, 0
        %v500 = vsel %vm468, %v430, 0
        %v503 = vsel %vm468, %v431, 0
        %v506 = vsel %vm468, %v432, 0
        %v509 = vsel %vm468, %v433, 0
        %v512 = vsel %vm468, %v434, 0
        %v515 = vsel %vm468, %v435, 0
        %v518 = vsel %vm468, %v452, 0
        %v521 = vsel %vm468, %v453, 0
        %v524 = vsel %vm468, %v454, 0
        %v527 = vsel %vm468, %v455, 0
        %v530 = vsel %vm468, %v456, 0
        %v533 = vsel %vm468, %v457, 0
        %v536 = vsel %vm468, %v458, 0
        %v539 = vsel %vm468, %v459, 0
        %v542 = vsel %vm468, %v460, 0
        %v545 = vsel %vm468, %v461, 0
        %v548 = vsel %vm468, %v462, 0
        %v551 = vsel %vm468, %v463, 0
        %v554 = vsel %vm468, %v464, 0
        %v557 = vsel %vm468, %v465, 0
        %v560 = vsel %vm468, %v466, 0
        %v563 = vsel %vm468, %v467, 0
        %565 = vmatprep.subr.mxu0 0.0
        %v566 = vand.u32 %v399, 4294901760
        %567 = vmatpush1.msra.mxu0 %v566
        %568 = vmatprep.subr.mxu0 0.0
        %v569 = vand.u32 %v400, 4294901760
        %570 = vmatpush1.msra.mxu0 %v569
        %571 = vmatprep.subr.mxu0 0.0
        %v572 = vand.u32 %v401, 4294901760
        %573 = vmatpush1.msra.mxu0 %v572
        %574 = vmatprep.subr.mxu0 0.0
        %v575 = vand.u32 %v402, 4294901760
        %576 = vmatpush1.msra.mxu0 %v575
        %577 = vmatprep.subr.mxu0 0.0
        %v578 = vand.u32 %v403, 4294901760
        %579 = vmatpush1.msra.mxu0 %v578
        %580 = vmatprep.subr.mxu0 0.0
        %581 = vmatpush1.msra.mxu0 0.0
        %582 = vmatprep.subr.mxu0 0.0
        %583 = vmatpush1.msra.mxu0 0.0
        %584 = vmatprep.subr.mxu0 0.0
        %585 = vmatpush1.msra.mxu0 0.0
        %586 = vmatprep.subr.mxu0 0.0
        %587 = vmatpush1.msra.mxu0 0.0
        %588 = vmatprep.subr.mxu0 0.0
        %589 = vmatpush1.msra.mxu0 0.0
        %590 = vmatprep.subr.mxu0 0.0
        %591 = vmatpush1.msra.mxu0 0.0
        %592 = vmatprep.subr.mxu0 0.0
        %593 = vmatpush1.msra.mxu0 0.0
        %594 = vmatprep.subr.mxu0 0.0
        %595 = vmatpush1.msra.mxu0 0.0
        %596 = vmatprep.subr.mxu0 0.0
        %597 = vmatpush1.msra.mxu0 0.0
        %598 = vmatprep.subr.mxu0 0.0
        %599 = vmatpush1.msra.mxu0 0.0
        %600 = vmatprep.subr.mxu0 0.0
        %601 = vmatpush1.msra.mxu0 0.0
        %602 = vmatprep.subr.mxu0 0.0
        %603 = vmatpush1.msra.mxu0 0.0
        %604 = vmatprep.subr.mxu0 0.0
        %605 = vmatpush1.msra.mxu0 0.0
        %606 = vmatprep.subr.mxu0 0.0
        %607 = vmatpush1.msra.mxu0 0.0
        %608 = vmatprep.subr.mxu0 0.0
        %609 = vmatpush1.msra.mxu0 0.0
        %610 = vmatprep.subr.mxu0 0.0
        %611 = vmatpush1.msra.mxu0 0.0
        %612 = vmatprep.subr.mxu0 0.0
        %613 = vmatpush1.msra.mxu0 0.0
        %614 = vmatprep.subr.mxu0 0.0
        %615 = vmatpush1.msra.mxu0 0.0
        %616 = vmatprep.subr.mxu0 0.0
        %617 = vmatpush1.msra.mxu0 0.0
        %618 = vmatprep.subr.mxu0 0.0
        %619 = vmatpush1.msra.mxu0 0.0
        %620 = vmatprep.subr.mxu0 0.0
        %621 = vmatpush1.msra.mxu0 0.0
        %622 = vmatprep.subr.mxu0 0.0
        %623 = vmatpush1.msra.mxu0 0.0
        %624 = vmatprep.subr.mxu0 0.0
        %625 = vmatpush1.msra.mxu0 0.0
        %626 = vmatprep.subr.mxu0 0.0
        %627 = vmatpush1.msra.mxu0 0.0
        %628 = vmatprep.subr.mxu0 0.0
        %629 = vmatpush1.msra.mxu0 0.0
        %630 = vmatprep.subr.mxu0 0.0
        %631 = vmatpush1.msra.mxu0 0.0
        %632 = vmatprep.subr.mxu0 0.0
        %633 = vmatpush1.msra.mxu0 0.0
        %634 = vmatprep.mubr.f32.mxu0 0.0
        %v635 = vand.u32 %v470, 4294901760
        %v636 = vsub.f32 %v470, %v635
        %v637 = vand.u32 %v636, 4294901760
        %v638 = vsub.f32 %v636, %v637
        %v639 = vand.u32 %v638, 4294901760
        %640 = vmatmul.mubr.f32.gmra.mrb[0].mxu0 %v639
        %v641 = vpop.f32.mrb[0].mxu0
        %v642 = vadd.f32 0.0, %v641
        %v643 = vpop.f32.mrb[0].mxu0
        %644 = vmatprep.mubr.f32.mxu0 0.0
        %v645 = vand.u32 %v473, 4294901760
        %v646 = vsub.f32 %v473, %v645
        %v647 = vand.u32 %v646, 4294901760
        %v648 = vsub.f32 %v646, %v647
        %v649 = vand.u32 %v648, 4294901760
        %650 = vmatmul.mubr.f32.gmra.mrb[0].mxu0 %v649
        %v651 = vpop.f32.mrb[0].mxu0
        %v652 = vadd.f32 0.0, %v651
        %v653 = vpop.f32.mrb[0].mxu0
        %654 = vmatprep.mubr.f32.mxu0 0.0
        %v655 = vand.u32 %v476, 4294901760
        %v656 = vsub.f32 %v476, %v655
        %v657 = vand.u32 %v656, 4294901760
        %v658 = vsub.f32 %v656, %v657
        %v659 = vand.u32 %v658, 4294901760
        %660 = vmatmul.mubr.f32.gmra.mrb[0].mxu0 %v659
        %v661 = vpop.f32.mrb[0].mxu0
        %v662 = vadd.f32 0.0, %v661
        %v663 = vpop.f32.mrb[0].mxu0
        %664 = vmatprep.mubr.f32.mxu0 0.0
        %v665 = vand.u32 %v479, 4294901760
        %v666 = vsub.f32 %v479, %v665
        %v667 = vand.u32 %v666, 4294901760
        %v668 = vsub.f32 %v666, %v667
        %v669 = vand.u32 %v668, 4294901760
        %670 = vmatmul.mubr.f32.gmra.mrb[0].mxu0 %v669
        %v671 = vpop.f32.mrb[0].mxu0
        %v672 = vadd.f32 0.0, %v671
        %v673 = vpop.f32.mrb[0].mxu0
        %674 = vmatprep.mubr.f32.mxu0 0.0
        %v675 = vand.u32 %v482, 4294901760
        %v676 = vsub.f32 %v482, %v675
        %v677 = vand.u32 %v676, 4294901760
        %v678 = vsub.f32 %v676, %v677
        %v679 = vand.u32 %v678, 4294901760
        %680 = vmatmul.mubr.f32.gmra.mrb[0].mxu0 %v679
        %v681 = vpop.f32.mrb[0].mxu0
        %v682 = vadd.f32 0.0, %v681
        %v683 = vpop.f32.mrb[0].mxu0
        %684 = vmatprep.mubr.f32.mxu0 0.0
        %v685 = vand.u32 %v485, 4294901760
        %v686 = vsub.f32 %v485, %v685
        %v687 = vand.u32 %v686, 4294901760
        %v688 = vsub.f32 %v686, %v687
        %v689 = vand.u32 %v688, 4294901760
        %690 = vmatmul.mubr.f32.gmra.mrb[0].mxu0 %v689
        %v691 = vpop.f32.mrb[0].mxu0
        %v692 = vadd.f32 0.0, %v691
        %v693 = vpop.f32.mrb[0].mxu0
        %694 = vmatprep.mubr.f32.mxu0 0.0
        %v695 = vand.u32 %v488, 4294901760
        %v696 = vsub.f32 %v488, %v695
        %v697 = vand.u32 %v696, 4294901760
        %v698 = vsub.f32 %v696, %v697
        %v699 = vand.u32 %v698, 4294901760
        %700 = vmatmul.mubr.f32.gmra.mrb[0].mxu0 %v699
        %v701 = vpop.f32.mrb[0].mxu0
        %v702 = vadd.f32 0.0, %v701
        %v703 = vpop.f32.mrb[0].mxu0
        %704 = vmatprep.mubr.f32.mxu0 0.0
        %v705 = vand.u32 %v491, 4294901760
        %v706 = vsub.f32 %v491, %v705
        %v707 = vand.u32 %v706, 4294901760
        %v708 = vsub.f32 %v706, %v707
        %v709 = vand.u32 %v708, 4294901760
        %710 = vmatmul.mubr.f32.gmra.mrb[0].mxu0 %v709
        %v711 = vpop.f32.mrb[0].mxu0
        %v712 = vadd.f32 0.0, %v711
        %v713 = vpop.f32.mrb[0].mxu0
        %714 = vmatprep.mubr.f32.mxu0 0.0
        %v715 = vand.u32 %v494, 4294901760
        %v716 = vsub.f32 %v494, %v715
        %v717 = vand.u32 %v716, 4294901760
        %v718 = vsub.f32 %v716, %v717
        %v719 = vand.u32 %v718, 4294901760
        %720 = vmatmul.mubr.f32.gmra.mrb[0].mxu0 %v719
        %v721 = vpop.f32.mrb[0].mxu0
        %v722 = vadd.f32 0.0, %v721
        %v723 = vpop.f32.mrb[0].mxu0
        %724 = vmatprep.mubr.f32.mxu0 0.0
        %v725 = vand.u32 %v497, 4294901760
        %v726 = vsub.f32 %v497, %v725
        %v727 = vand.u32 %v726, 4294901760
        %v728 = vsub.f32 %v726, %v727
        %v729 = vand.u32 %v728, 4294901760
        %730 = vmatmul.mubr.f32.gmra.mrb[0].mxu0 %v729
        %v731 = vpop.f32.mrb[0].mxu0
        %v732 = vadd.f32 0.0, %v731
        %v733 = vpop.f32.mrb[0].mxu0
        %734 = vmatprep.mubr.f32.mxu0 0.0
        %v735 = vand.u32 %v500, 4294901760
        %v736 = vsub.f32 %v500, %v735
        %v737 = vand.u32 %v736, 4294901760
        %v738 = vsub.f32 %v736, %v737
        %v739 = vand.u32 %v738, 4294901760
        %740 = vmatmul.mubr.f32.gmra.mrb[0].mxu0 %v739
        %v741 = vpop.f32.mrb[0].mxu0
        %v742 = vadd.f32 0.0, %v741
        %v743 = vpop.f32.mrb[0].mxu0
        %744 = vmatprep.mubr.f32.mxu0 0.0
        %v745 = vand.u32 %v503, 4294901760
        %v746 = vsub.f32 %v503, %v745
        %v747 = vand.u32 %v746, 4294901760
        %v748 = vsub.f32 %v746, %v747
        %v749 = vand.u32 %v748, 4294901760
        %750 = vmatmul.mubr.f32.gmra.mrb[0].mxu0 %v749
        %v751 = vpop.f32.mrb[0].mxu0
        %v752 = vadd.f32 0.0, %v751
        %v753 = vpop.f32.mrb[0].mxu0
        %754 = vmatprep.mubr.f32.mxu0 0.0
        %v755 = vand.u32 %v506, 4294901760
        %v756 = vsub.f32 %v506, %v755
        %v757 = vand.u32 %v756, 4294901760
        %v758 = vsub.f32 %v756, %v757
        %v759 = vand.u32 %v758, 4294901760
        %760 = vmatmul.mubr.f32.gmra.mrb[0].mxu0 %v759
        %v761 = vpop.f32.mrb[0].mxu0
        %v762 = vadd.f32 0.0, %v761
        %v763 = vpop.f32.mrb[0].mxu0
        %764 = vmatprep.mubr.f32.mxu0 0.0
        %v765 = vand.u32 %v509, 4294901760
        %v766 = vsub.f32 %v509, %v765
        %v767 = vand.u32 %v766, 4294901760
        %v768 = vsub.f32 %v766, %v767
        %v769 = vand.u32 %v768, 4294901760
        %770 = vmatmul.mubr.f32.gmra.mrb[0].mxu0 %v769
        %v771 = vpop.f32.mrb[0].mxu0
        %v772 = vadd.f32 0.0, %v771
        %v773 = vpop.f32.mrb[0].mxu0
        %774 = vmatprep.mubr.f32.mxu0 0.0
        %v775 = vand.u32 %v512, 4294901760
        %v776 = vsub.f32 %v512, %v775
        %v777 = vand.u32 %v776, 4294901760
        %v778 = vsub.f32 %v776, %v777
        %v779 = vand.u32 %v778, 4294901760
        %780 = vmatmul.mubr.f32.gmra.mrb[0].mxu0 %v779
        %v781 = vpop.f32.mrb[0].mxu0
        %v782 = vadd.f32 0.0, %v781
        %v783 = vpop.f32.mrb[0].mxu0
        %784 = vmatprep.mubr.f32.mxu0 0.0
        %v785 = vand.u32 %v515, 4294901760
        %v786 = vsub.f32 %v515, %v785
        %v787 = vand.u32 %v786, 4294901760
        %v788 = vsub.f32 %v786, %v787
        %v789 = vand.u32 %v788, 4294901760
        %790 = vmatmul.mubr.f32.gmra.mrb[0].mxu0 %v789
        %v791 = vpop.f32.mrb[0].mxu0
        %v792 = vadd.f32 0.0, %v791
        %v793 = vpop.f32.mrb[0].mxu0
        %794 = vmatprep.mubr.f32.mxu0 0.0
        %v795 = vand.u32 %v518, 4294901760
        %v796 = vsub.f32 %v518, %v795
        %v797 = vand.u32 %v796, 4294901760
        %v798 = vsub.f32 %v796, %v797
        %v799 = vand.u32 %v798, 4294901760
        %800 = vmatmul.mubr.f32.gmra.mrb[0].mxu0 %v799
        %v801 = vpop.f32.mrb[0].mxu0
        %v802 = vadd.f32 0.0, %v801
        %v803 = vpop.f32.mrb[0].mxu0
        %804 = vmatprep.mubr.f32.mxu0 0.0
        %v805 = vand.u32 %v521, 4294901760
        %v806 = vsub.f32 %v521, %v805
        %v807 = vand.u32 %v806, 4294901760
        %v808 = vsub.f32 %v806, %v807
        %v809 = vand.u32 %v808, 4294901760
        %810 = vmatmul.mubr.f32.gmra.mrb[0].mxu0 %v809
        %v811 = vpop.f32.mrb[0].mxu0
        %v812 = vadd.f32 0.0, %v811
        %v813 = vpop.f32.mrb[0].mxu0
        %814 = vmatprep.mubr.f32.mxu0 0.0
        %v815 = vand.u32 %v524, 4294901760
        %v816 = vsub.f32 %v524, %v815
        %v817 = vand.u32 %v816, 4294901760
        %v818 = vsub.f32 %v816, %v817
        %v819 = vand.u32 %v818, 4294901760
        %820 = vmatmul.mubr.f32.gmra.mrb[0].mxu0 %v819
        %v821 = vpop.f32.mrb[0].mxu0
        %v822 = vadd.f32 0.0, %v821
        %v823 = vpop.f32.mrb[0].mxu0
        %824 = vmatprep.mubr.f32.mxu0 0.0
        %v825 = vand.u32 %v527, 4294901760
        %v826 = vsub.f32 %v527, %v825
        %v827 = vand.u32 %v826, 4294901760
        %v828 = vsub.f32 %v826, %v827
        %v829 = vand.u32 %v828, 4294901760
        %830 = vmatmul.mubr.f32.gmra.mrb[0].mxu0 %v829
        %v831 = vpop.f32.mrb[0].mxu0
        %v832 = vadd.f32 0.0, %v831
        %v833 = vpop.f32.mrb[0].mxu0
        %834 = vmatprep.mubr.f32.mxu0 0.0
        %v835 = vand.u32 %v530, 4294901760
        %v836 = vsub.f32 %v530, %v835
        %v837 = vand.u32 %v836, 4294901760
        %v838 = vsub.f32 %v836, %v837
        %v839 = vand.u32 %v838, 4294901760
        %840 = vmatmul.mubr.f32.gmra.mrb[0].mxu0 %v839
        %v841 = vpop.f32.mrb[0].mxu0
        %v842 = vadd.f32 0.0, %v841
        %v843 = vpop.f32.mrb[0].mxu0
        %844 = vmatprep.mubr.f32.mxu0 0.0
        %v845 = vand.u32 %v533, 4294901760
        %v846 = vsub.f32 %v533, %v845
        %v847 = vand.u32 %v846, 4294901760
        %v848 = vsub.f32 %v846, %v847
        %v849 = vand.u32 %v848, 4294901760
        %850 = vmatmul.mubr.f32.gmra.mrb[0].mxu0 %v849
        %v851 = vpop.f32.mrb[0].mxu0
        %v852 = vadd.f32 0.0, %v851
        %v853 = vpop.f32.mrb[0].mxu0
        %854 = vmatprep.mubr.f32.mxu0 0.0
        %v855 = vand.u32 %v536, 4294901760
        %v856 = vsub.f32 %v536, %v855
        %v857 = vand.u32 %v856, 4294901760
        %v858 = vsub.f32 %v856, %v857
        %v859 = vand.u32 %v858, 4294901760
        %860 = vmatmul.mubr.f32.gmra.mrb[0].mxu0 %v859
        %v861 = vpop.f32.mrb[0].mxu0
        %v862 = vadd.f32 0.0, %v861
        %v863 = vpop.f32.mrb[0].mxu0
        %864 = vmatprep.mubr.f32.mxu0 0.0
        %v865 = vand.u32 %v539, 4294901760
        %v866 = vsub.f32 %v539, %v865
        %v867 = vand.u32 %v866, 4294901760
        %v868 = vsub.f32 %v866, %v867
        %v869 = vand.u32 %v868, 4294901760
        %870 = vmatmul.mubr.f32.gmra.mrb[0].mxu0 %v869
        %v871 = vpop.f32.mrb[0].mxu0
        %v872 = vadd.f32 0.0, %v871
        %v873 = vpop.f32.mrb[0].mxu0
        %874 = vmatprep.mubr.f32.mxu0 0.0
        %v875 = vand.u32 %v542, 4294901760
        %v876 = vsub.f32 %v542, %v875
        %v877 = vand.u32 %v876, 4294901760
        %v878 = vsub.f32 %v876, %v877
        %v879 = vand.u32 %v878, 4294901760
        %880 = vmatmul.mubr.f32.gmra.mrb[0].mxu0 %v879
        %v881 = vpop.f32.mrb[0].mxu0
        %v882 = vadd.f32 0.0, %v881
        %v883 = vpop.f32.mrb[0].mxu0
        %884 = vmatprep.mubr.f32.mxu0 0.0
        %v885 = vand.u32 %v545, 4294901760
        %v886 = vsub.f32 %v545, %v885
        %v887 = vand.u32 %v886, 4294901760
        %v888 = vsub.f32 %v886, %v887
        %v889 = vand.u32 %v888, 4294901760
        %890 = vmatmul.mubr.f32.gmra.mrb[0].mxu0 %v889
        %v891 = vpop.f32.mrb[0].mxu0
        %v892 = vadd.f32 0.0, %v891
        %v893 = vpop.f32.mrb[0].mxu0
        %894 = vmatprep.mubr.f32.mxu0 0.0
        %v895 = vand.u32 %v548, 4294901760
        %v896 = vsub.f32 %v548, %v895
        %v897 = vand.u32 %v896, 4294901760
        %v898 = vsub.f32 %v896, %v897
        %v899 = vand.u32 %v898, 4294901760
        %900 = vmatmul.mubr.f32.gmra.mrb[0].mxu0 %v899
        %v901 = vpop.f32.mrb[0].mxu0
        %v902 = vadd.f32 0.0, %v901
        %v903 = vpop.f32.mrb[0].mxu0
        %904 = vmatprep.mubr.f32.mxu0 0.0
        %v905 = vand.u32 %v551, 4294901760
        %v906 = vsub.f32 %v551, %v905
        %v907 = vand.u32 %v906, 4294901760
        %v908 = vsub.f32 %v906, %v907
        %v909 = vand.u32 %v908, 4294901760
        %910 = vmatmul.mubr.f32.gmra.mrb[0].mxu0 %v909
        %v911 = vpop.f32.mrb[0].mxu0
        %v912 = vadd.f32 0.0, %v911
        %v913 = vpop.f32.mrb[0].mxu0
        %914 = vmatprep.mubr.f32.mxu0 0.0
        %v915 = vand.u32 %v554, 4294901760
        %v916 = vsub.f32 %v554, %v915
        %v917 = vand.u32 %v916, 4294901760
        %v918 = vsub.f32 %v916, %v917
        %v919 = vand.u32 %v918, 4294901760
        %920 = vmatmul.mubr.f32.gmra.mrb[0].mxu0 %v919
        %v921 = vpop.f32.mrb[0].mxu0
        %v922 = vadd.f32 0.0, %v921
        %v923 = vpop.f32.mrb[0].mxu0
        %924 = vmatprep.mubr.f32.mxu0 0.0
        %v925 = vand.u32 %v557, 4294901760
        %v926 = vsub.f32 %v557, %v925
        %v927 = vand.u32 %v926, 4294901760
        %v928 = vsub.f32 %v926, %v927
        %v929 = vand.u32 %v928, 4294901760
        %930 = vmatmul.mubr.f32.gmra.mrb[0].mxu0 %v929
        %v931 = vpop.f32.mrb[0].mxu0
        %v932 = vadd.f32 0.0, %v931
        %v933 = vpop.f32.mrb[0].mxu0
        %934 = vmatprep.mubr.f32.mxu0 0.0
        %v935 = vand.u32 %v560, 4294901760
        %v936 = vsub.f32 %v560, %v935
        %v937 = vand.u32 %v936, 4294901760
        %v938 = vsub.f32 %v936, %v937
        %v939 = vand.u32 %v938, 4294901760
        %940 = vmatmul.mubr.f32.gmra.mrb[0].mxu0 %v939
        %v941 = vpop.f32.mrb[0].mxu0
        %v942 = vadd.f32 0.0, %v941
        %v943 = vpop.f32.mrb[0].mxu0
        %944 = vmatprep.mubr.f32.mxu0 0.0
        %v945 = vand.u32 %v563, 4294901760
        %v946 = vsub.f32 %v563, %v945
        %v947 = vand.u32 %v946, 4294901760
        %v948 = vsub.f32 %v946, %v947
        %v949 = vand.u32 %v948, 4294901760
        %950 = vmatmul.mubr.f32.gmra.mrb[0].mxu0 %v949
        %v951 = vpop.f32.mrb[0].mxu0
        %v952 = vadd.f32 0.0, %v951
        %v953 = vpop.f32.mrb[0].mxu0
        %954 = vdwg.mxu0
        %955 = vmatprep.subr.mxu0 0.0
        %v956 = vand.u32 %v399, 4294901760
        %v957 = vsub.f32 %v399, %v956
        %v958 = vand.u32 %v957, 4294901760
        %v959 = vsub.f32 %v957, %v958
        %v960 = vand.u32 %v959, 4294901760
        %961 = vmatpush1.msra.mxu0 %v960
        %962 = vmatprep.subr.mxu0 0.0
        %v963 = vand.u32 %v400, 4294901760
        %v964 = vsub.f32 %v400, %v963
        %v965 = vand.u32 %v964, 4294901760
        %v966 = vsub.f32 %v964, %v965
        %v967 = vand.u32 %v966, 4294901760
        %968 = vmatpush1.msra.mxu0 %v967
        %969 = vmatprep.subr.mxu0 0.0
        %v970 = vand.u32 %v401, 4294901760
        %v971 = vsub.f32 %v401, %v970
        %v972 = vand.u32 %v971, 4294901760
        %v973 = vsub.f32 %v971, %v972
        %v974 = vand.u32 %v973, 4294901760
        %975 = vmatpush1.msra.mxu0 %v974
        %976 = vmatprep.subr.mxu0 0.0
        %v977 = vand.u32 %v402, 4294901760
        %v978 = vsub.f32 %v402, %v977
        %v979 = vand.u32 %v978, 4294901760
        %v980 = vsub.f32 %v978, %v979
        %v981 = vand.u32 %v980, 4294901760
        %982 = vmatpush1.msra.mxu0 %v981
        %983 = vmatprep.subr.mxu0 0.0
        %v984 = vand.u32 %v403, 4294901760
        %v985 = vsub.f32 %v403, %v984
        %v986 = vand.u32 %v985, 4294901760
        %v987 = vsub.f32 %v985, %v986
        %v988 = vand.u32 %v987, 4294901760
        %989 = vmatpush1.msra.mxu0 %v988
        %990 = vmatprep.subr.mxu0 0.0
        %991 = vmatpush1.msra.mxu0 0.0
        %992 = vmatprep.subr.mxu0 0.0
        %993 = vmatpush1.msra.mxu0 0.0
        %994 = vmatprep.subr.mxu0 0.0
        %995 = vmatpush1.msra.mxu0 0.0
        %996 = vmatprep.subr.mxu0 0.0
        %997 = vmatpush1.msra.mxu0 0.0
        %998 = vmatprep.subr.mxu0 0.0
        %999 = vmatpush1.msra.mxu0 0.0
        %1000 = vmatprep.subr.mxu0 0.0
        %1001 = vmatpush1.msra.mxu0 0.0
        %1002 = vmatprep.subr.mxu0 0.0
        %1003 = vmatpush1.msra.mxu0 0.0
        %1004 = vmatprep.subr.mxu0 0.0
        %1005 = vmatpush1.msra.mxu0 0.0
        %1006 = vmatprep.subr.mxu0 0.0
        %1007 = vmatpush1.msra.mxu0 0.0
        %1008 = vmatprep.subr.mxu0 0.0
        %1009 = vmatpush1.msra.mxu0 0.0
        %1010 = vmatprep.subr.mxu0 0.0
        %1011 = vmatpush1.msra.mxu0 0.0
        %1012 = vmatprep.subr.mxu0 0.0
        %1013 = vmatpush1.msra.mxu0 0.0
        %1014 = vmatprep.subr.mxu0 0.0
        %1015 = vmatpush1.msra.mxu0 0.0
        %1016 = vmatprep.subr.mxu0 0.0
        %1017 = vmatpush1.msra.mxu0 0.0
        %1018 = vmatprep.subr.mxu0 0.0
        %1019 = vmatpush1.msra.mxu0 0.0
        %1020 = vmatprep.subr.mxu0 0.0
        %1021 = vmatpush1.msra.mxu0 0.0
        %1022 = vmatprep.subr.mxu0 0.0
        %1023 = vmatpush1.msra.mxu0 0.0
        %1024 = vmatprep.subr.mxu0 0.0
        %1025 = vmatpush1.msra.mxu0 0.0
        %1026 = vmatprep.subr.mxu0 0.0
        %1027 = vmatpush1.msra.mxu0 0.0
        %1028 = vmatprep.subr.mxu0 0.0
        %1029 = vmatpush1.msra.mxu0 0.0
        %1030 = vmatprep.subr.mxu0 0.0
        %1031 = vmatpush1.msra.mxu0 0.0
        %1032 = vmatprep.subr.mxu0 0.0
        %1033 = vmatpush1.msra.mxu0 0.0
        %1034 = vmatprep.subr.mxu0 0.0
        %1035 = vmatpush1.msra.mxu0 0.0
        %1036 = vmatprep.subr.mxu0 0.0
        %1037 = vmatpush1.msra.mxu0 0.0
        %1038 = vmatprep.subr.mxu0 0.0
        %1039 = vmatpush1.msra.mxu0 0.0
        %1040 = vmatprep.subr.mxu0 0.0
        %1041 = vmatpush1.msra.mxu0 0.0
        %1042 = vmatprep.subr.mxu0 0.0
        %1043 = vmatpush1.msra.mxu0 0.0
        %1044 = vmatprep.mubr.f32.mxu0 0.0
        %v1045 = vand.u32 %v470, 4294901760
        %1046 = vmatmul.mubr.f32.gmra.mrb[0].mxu0 %v1045
        %v1047 = vpop.f32.mrb[0].mxu0
        %v1048 = vadd.f32 %v642, %v1047
        %v1049 = vpop.f32.mrb[0].mxu0
        %1050 = vmatprep.mubr.f32.mxu0 0.0
        %v1051 = vand.u32 %v473, 4294901760
        %1052 = vmatmul.mubr.f32.gmra.mrb[0].mxu0 %v1051
        %v1053 = vpop.f32.mrb[0].mxu0
        %v1054 = vadd.f32 %v652, %v1053
        %v1055 = vpop.f32.mrb[0].mxu0
        %1056 = vmatprep.mubr.f32.mxu0 0.0
        %v1057 = vand.u32 %v476, 4294901760
        %1058 = vmatmul.mubr.f32.gmra.mrb[0].mxu0 %v1057
        %v1059 = vpop.f32.mrb[0].mxu0
        %v1060 = vadd.f32 %v662, %v1059
        %v1061 = vpop.f32.mrb[0].mxu0
        %1062 = vmatprep.mubr.f32.mxu0 0.0
        %v1063 = vand.u32 %v479, 4294901760
        %1064 = vmatmul.mubr.f32.gmra.mrb[0].mxu0 %v1063
        %v1065 = vpop.f32.mrb[0].mxu0
        %v1066 = vadd.f32 %v672, %v1065
        %v1067 = vpop.f32.mrb[0].mxu0
        %1068 = vmatprep.mubr.f32.mxu0 0.0
        %v1069 = vand.u32 %v482, 4294901760
        %1070 = vmatmul.mubr.f32.gmra.mrb[0].mxu0 %v1069
        %v1071 = vpop.f32.mrb[0].mxu0
        %v1072 = vadd.f32 %v682, %v1071
        %v1073 = vpop.f32.mrb[0].mxu0
        %1074 = vmatprep.mubr.f32.mxu0 0.0
        %v1075 = vand.u32 %v485, 4294901760
        %1076 = vmatmul.mubr.f32.gmra.mrb[0].mxu0 %v1075
        %v1077 = vpop.f32.mrb[0].mxu0
        %v1078 = vadd.f32 %v692, %v1077
        %v1079 = vpop.f32.mrb[0].mxu0
        %1080 = vmatprep.mubr.f32.mxu0 0.0
        %v1081 = vand.u32 %v488, 4294901760
        %1082 = vmatmul.mubr.f32.gmra.mrb[0].mxu0 %v1081
        %v1083 = vpop.f32.mrb[0].mxu0
        %v1084 = vadd.f32 %v702, %v1083
        %v1085 = vpop.f32.mrb[0].mxu0
        %1086 = vmatprep.mubr.f32.mxu0 0.0
        %v1087 = vand.u32 %v491, 4294901760
        %1088 = vmatmul.mubr.f32.gmra.mrb[0].mxu0 %v1087
        %v1089 = vpop.f32.mrb[0].mxu0
        %v1090 = vadd.f32 %v712, %v1089
        %v1091 = vpop.f32.mrb[0].mxu0
        %1092 = vmatprep.mubr.f32.mxu0 0.0
        %v1093 = vand.u32 %v494, 4294901760
        %1094 = vmatmul.mubr.f32.gmra.mrb[0].mxu0 %v1093
        %v1095 = vpop.f32.mrb[0].mxu0
        %v1096 = vadd.f32 %v722, %v1095
        %v1097 = vpop.f32.mrb[0].mxu0
        %1098 = vmatprep.mubr.f32.mxu0 0.0
        %v1099 = vand.u32 %v497, 4294901760
        %1100 = vmatmul.mubr.f32.gmra.mrb[0].mxu0 %v1099
        %v1101 = vpop.f32.mrb[0].mxu0
        %v1102 = vadd.f32 %v732, %v1101
        %v1103 = vpop.f32.mrb[0].mxu0
        %1104 = vmatprep.mubr.f32.mxu0 0.0
        %v1105 = vand.u32 %v500, 4294901760
        %1106 = vmatmul.mubr.f32.gmra.mrb[0].mxu0 %v1105
        %v1107 = vpop.f32.mrb[0].mxu0
        %v1108 = vadd.f32 %v742, %v1107
        %v1109 = vpop.f32.mrb[0].mxu0
        %1110 = vmatprep.mubr.f32.mxu0 0.0
        %v1111 = vand.u32 %v503, 4294901760
        %1112 = vmatmul.mubr.f32.gmra.mrb[0].mxu0 %v1111
        %v1113 = vpop.f32.mrb[0].mxu0
        %v1114 = vadd.f32 %v752, %v1113
        %v1115 = vpop.f32.mrb[0].mxu0
        %1116 = vmatprep.mubr.f32.mxu0 0.0
        %v1117 = vand.u32 %v506, 4294901760
        %1118 = vmatmul.mubr.f32.gmra.mrb[0].mxu0 %v1117
        %v1119 = vpop.f32.mrb[0].mxu0
        %v1120 = vadd.f32 %v762, %v1119
        %v1121 = vpop.f32.mrb[0].mxu0
        %1122 = vmatprep.mubr.f32.mxu0 0.0
        %v1123 = vand.u32 %v509, 4294901760
        %1124 = vmatmul.mubr.f32.gmra.mrb[0].mxu0 %v1123
        %v1125 = vpop.f32.mrb[0].mxu0
        %v1126 = vadd.f32 %v772, %v1125
        %v1127 = vpop.f32.mrb[0].mxu0
        %1128 = vmatprep.mubr.f32.mxu0 0.0
        %v1129 = vand.u32 %v512, 4294901760
        %1130 = vmatmul.mubr.f32.gmra.mrb[0].mxu0 %v1129
        %v1131 = vpop.f32.mrb[0].mxu0
        %v1132 = vadd.f32 %v782, %v1131
        %v1133 = vpop.f32.mrb[0].mxu0
        %1134 = vmatprep.mubr.f32.mxu0 0.0
        %v1135 = vand.u32 %v515, 4294901760
        %1136 = vmatmul.mubr.f32.gmra.mrb[0].mxu0 %v1135
        %v1137 = vpop.f32.mrb[0].mxu0
        %v1138 = vadd.f32 %v792, %v1137
        %v1139 = vpop.f32.mrb[0].mxu0
        %1140 = vmatprep.mubr.f32.mxu0 0.0
        %v1141 = vand.u32 %v518, 4294901760
        %1142 = vmatmul.mubr.f32.gmra.mrb[0].mxu0 %v1141
        %v1143 = vpop.f32.mrb[0].mxu0
        %v1144 = vadd.f32 %v802, %v1143
        %v1145 = vpop.f32.mrb[0].mxu0
        %1146 = vmatprep.mubr.f32.mxu0 0.0
        %v1147 = vand.u32 %v521, 4294901760
        %1148 = vmatmul.mubr.f32.gmra.mrb[0].mxu0 %v1147
        %v1149 = vpop.f32.mrb[0].mxu0
        %v1150 = vadd.f32 %v812, %v1149
        %v1151 = vpop.f32.mrb[0].mxu0
        %1152 = vmatprep.mubr.f32.mxu0 0.0
        %v1153 = vand.u32 %v524, 4294901760
        %1154 = vmatmul.mubr.f32.gmra.mrb[0].mxu0 %v1153
        %v1155 = vpop.f32.mrb[0].mxu0
        %v1156 = vadd.f32 %v822, %v1155
        %v1157 = vpop.f32.mrb[0].mxu0
        %1158 = vmatprep.mubr.f32.mxu0 0.0
        %v1159 = vand.u32 %v527, 4294901760
        %1160 = vmatmul.mubr.f32.gmra.mrb[0].mxu0 %v1159
        %v1161 = vpop.f32.mrb[0].mxu0
        %v1162 = vadd.f32 %v832, %v1161
        %v1163 = vpop.f32.mrb[0].mxu0
        %1164 = vmatprep.mubr.f32.mxu0 0.0
        %v1165 = vand.u32 %v530, 4294901760
        %1166 = vmatmul.mubr.f32.gmra.mrb[0].mxu0 %v1165
        %v1167 = vpop.f32.mrb[0].mxu0
        %v1168 = vadd.f32 %v842, %v1167
        %v1169 = vpop.f32.mrb[0].mxu0
        %1170 = vmatprep.mubr.f32.mxu0 0.0
        %v1171 = vand.u32 %v533, 4294901760
        %1172 = vmatmul.mubr.f32.gmra.mrb[0].mxu0 %v1171
        %v1173 = vpop.f32.mrb[0].mxu0
        %v1174 = vadd.f32 %v852, %v1173
        %v1175 = vpop.f32.mrb[0].mxu0
        %1176 = vmatprep.mubr.f32.mxu0 0.0
        %v1177 = vand.u32 %v536, 4294901760
        %1178 = vmatmul.mubr.f32.gmra.mrb[0].mxu0 %v1177
        %v1179 = vpop.f32.mrb[0].mxu0
        %v1180 = vadd.f32 %v862, %v1179
        %v1181 = vpop.f32.mrb[0].mxu0
        %1182 = vmatprep.mubr.f32.mxu0 0.0
        %v1183 = vand.u32 %v539, 4294901760
        %1184 = vmatmul.mubr.f32.gmra.mrb[0].mxu0 %v1183
        %v1185 = vpop.f32.mrb[0].mxu0
        %v1186 = vadd.f32 %v872, %v1185
        %v1187 = vpop.f32.mrb[0].mxu0
        %1188 = vmatprep.mubr.f32.mxu0 0.0
        %v1189 = vand.u32 %v542, 4294901760
        %1190 = vmatmul.mubr.f32.gmra.mrb[0].mxu0 %v1189
        %v1191 = vpop.f32.mrb[0].mxu0
        %v1192 = vadd.f32 %v882, %v1191
        %v1193 = vpop.f32.mrb[0].mxu0
        %1194 = vmatprep.mubr.f32.mxu0 0.0
        %v1195 = vand.u32 %v545, 4294901760
        %1196 = vmatmul.mubr.f32.gmra.mrb[0].mxu0 %v1195
        %v1197 = vpop.f32.mrb[0].mxu0
        %v1198 = vadd.f32 %v892, %v1197
        %v1199 = vpop.f32.mrb[0].mxu0
        %1200 = vmatprep.mubr.f32.mxu0 0.0
        %v1201 = vand.u32 %v548, 4294901760
        %1202 = vmatmul.mubr.f32.gmra.mrb[0].mxu0 %v1201
        %v1203 = vpop.f32.mrb[0].mxu0
        %v1204 = vadd.f32 %v902, %v1203
        %v1205 = vpop.f32.mrb[0].mxu0
        %1206 = vmatprep.mubr.f32.mxu0 0.0
        %v1207 = vand.u32 %v551, 4294901760
        %1208 = vmatmul.mubr.f32.gmra.mrb[0].mxu0 %v1207
        %v1209 = vpop.f32.mrb[0].mxu0
        %v1210 = vadd.f32 %v912, %v1209
        %v1211 = vpop.f32.mrb[0].mxu0
        %1212 = vmatprep.mubr.f32.mxu0 0.0
        %v1213 = vand.u32 %v554, 4294901760
        %1214 = vmatmul.mubr.f32.gmra.mrb[0].mxu0 %v1213
        %v1215 = vpop.f32.mrb[0].mxu0
        %v1216 = vadd.f32 %v922, %v1215
        %v1217 = vpop.f32.mrb[0].mxu0
        %1218 = vmatprep.mubr.f32.mxu0 0.0
        %v1219 = vand.u32 %v557, 4294901760
        %1220 = vmatmul.mubr.f32.gmra.mrb[0].mxu0 %v1219
        %v1221 = vpop.f32.mrb[0].mxu0
        %v1222 = vadd.f32 %v932, %v1221
        %v1223 = vpop.f32.mrb[0].mxu0
        %1224 = vmatprep.mubr.f32.mxu0 0.0
        %v1225 = vand.u32 %v560, 4294901760
        %1226 = vmatmul.mubr.f32.gmra.mrb[0].mxu0 %v1225
        %v1227 = vpop.f32.mrb[0].mxu0
        %v1228 = vadd.f32 %v942, %v1227
        %v1229 = vpop.f32.mrb[0].mxu0
        %1230 = vmatprep.mubr.f32.mxu0 0.0
        %v1231 = vand.u32 %v563, 4294901760
        %1232 = vmatmul.mubr.f32.gmra.mrb[0].mxu0 %v1231
        %v1233 = vpop.f32.mrb[0].mxu0
        %v1234 = vadd.f32 %v952, %v1233
        %v1235 = vpop.f32.mrb[0].mxu0
        %1236 = vdwg.mxu0
        %1237 = vmatprep.subr.mxu0 0.0
        %v1238 = vand.u32 %v399, 4294901760
        %v1239 = vsub.f32 %v399, %v1238
        %1240 = vmatpush1.msra.mxu0 %v1239
        %1241 = vmatprep.subr.mxu0 0.0
        %v1242 = vand.u32 %v400, 4294901760
        %v1243 = vsub.f32 %v400, %v1242
        %1244 = vmatpush1.msra.mxu0 %v1243
        %1245 = vmatprep.subr.mxu0 0.0
        %v1246 = vand.u32 %v401, 4294901760
        %v1247 = vsub.f32 %v401, %v1246
        %1248 = vmatpush1.msra.mxu0 %v1247
        %1249 = vmatprep.subr.mxu0 0.0
        %v1250 = vand.u32 %v402, 4294901760
        %v1251 = vsub.f32 %v402, %v1250
        %1252 = vmatpush1.msra.mxu0 %v1251
        %1253 = vmatprep.subr.mxu0 0.0
        %v1254 = vand.u32 %v403, 4294901760
        %v1255 = vsub.f32 %v403, %v1254
        %1256 = vmatpush1.msra.mxu0 %v1255
        %1257 = vmatprep.subr.mxu0 0.0
        %1258 = vmatpush1.msra.mxu0 0.0
        %1259 = vmatprep.subr.mxu0 0.0
        %1260 = vmatpush1.msra.mxu0 0.0
        %1261 = vmatprep.subr.mxu0 0.0
        %1262 = vmatpush1.msra.mxu0 0.0
        %1263 = vmatprep.subr.mxu0 0.0
        %1264 = vmatpush1.msra.mxu0 0.0
        %1265 = vmatprep.subr.mxu0 0.0
        %1266 = vmatpush1.msra.mxu0 0.0
        %1267 = vmatprep.subr.mxu0 0.0
        %1268 = vmatpush1.msra.mxu0 0.0
        %1269 = vmatprep.subr.mxu0 0.0
        %1270 = vmatpush1.msra.mxu0 0.0
        %1271 = vmatprep.subr.mxu0 0.0
        %1272 = vmatpush1.msra.mxu0 0.0
        %1273 = vmatprep.subr.mxu0 0.0
        %1274 = vmatpush1.msra.mxu0 0.0
        %1275 = vmatprep.subr.mxu0 0.0
        %1276 = vmatpush1.msra.mxu0 0.0
        %1277 = vmatprep.subr.mxu0 0.0
        %1278 = vmatpush1.msra.mxu0 0.0
        %1279 = vmatprep.subr.mxu0 0.0
        %1280 = vmatpush1.msra.mxu0 0.0
        %1281 = vmatprep.subr.mxu0 0.0
        %1282 = vmatpush1.msra.mxu0 0.0
        %1283 = vmatprep.subr.mxu0 0.0
        %1284 = vmatpush1.msra.mxu0 0.0
        %1285 = vmatprep.subr.mxu0 0.0
        %1286 = vmatpush1.msra.mxu0 0.0
        %1287 = vmatprep.subr.mxu0 0.0
        %1288 = vmatpush1.msra.mxu0 0.0
        %1289 = vmatprep.subr.mxu0 0.0
        %1290 = vmatpush1.msra.mxu0 0.0
        %1291 = vmatprep.subr.mxu0 0.0
        %1292 = vmatpush1.msra.mxu0 0.0
        %1293 = vmatprep.subr.mxu0 0.0
        %1294 = vmatpush1.msra.mxu0 0.0
        %1295 = vmatprep.subr.mxu0 0.0
        %1296 = vmatpush1.msra.mxu0 0.0
        %1297 = vmatprep.subr.mxu0 0.0
        %1298 = vmatpush1.msra.mxu0 0.0
        %1299 = vmatprep.subr.mxu0 0.0
        %1300 = vmatpush1.msra.mxu0 0.0
        %1301 = vmatprep.subr.mxu0 0.0
        %1302 = vmatpush1.msra.mxu0 0.0
        %1303 = vmatprep.subr.mxu0 0.0
        %1304 = vmatpush1.msra.mxu0 0.0
        %1305 = vmatprep.subr.mxu0 0.0
        %1306 = vmatpush1.msra.mxu0 0.0
        %1307 = vmatprep.subr.mxu0 0.0
        %1308 = vmatpush1.msra.mxu0 0.0
        %1309 = vmatprep.subr.mxu0 0.0
        %1310 = vmatpush1.msra.mxu0 0.0
        %1311 = vmatprep.mubr.f32.mxu0 0.0
        %v1312 = vand.u32 %v470, 4294901760
        %v1313 = vsub.f32 %v470, %v1312
        %1314 = vmatmul.mubr.f32.gmra.mrb[0].mxu0 %v1313
        %v1315 = vpop.f32.mrb[0].mxu0
        %v1316 = vadd.f32 %v1048, %v1315
        %v1317 = vpop.f32.mrb[0].mxu0
        %1318 = vmatprep.mubr.f32.mxu0 0.0
        %v1319 = vand.u32 %v473, 4294901760
        %v1320 = vsub.f32 %v473, %v1319
        %1321 = vmatmul.mubr.f32.gmra.mrb[0].mxu0 %v1320
        %v1322 = vpop.f32.mrb[0].mxu0
        %v1323 = vadd.f32 %v1054, %v1322
        %v1324 = vpop.f32.mrb[0].mxu0
        %1325 = vmatprep.mubr.f32.mxu0 0.0
        %v1326 = vand.u32 %v476, 4294901760
        %v1327 = vsub.f32 %v476, %v1326
        %1328 = vmatmul.mubr.f32.gmra.mrb[0].mxu0 %v1327
        %v1329 = vpop.f32.mrb[0].mxu0
        %v1330 = vadd.f32 %v1060, %v1329
        %v1331 = vpop.f32.mrb[0].mxu0
        %1332 = vmatprep.mubr.f32.mxu0 0.0
        %v1333 = vand.u32 %v479, 4294901760
        %v1334 = vsub.f32 %v479, %v1333
        %1335 = vmatmul.mubr.f32.gmra.mrb[0].mxu0 %v1334
        %v1336 = vpop.f32.mrb[0].mxu0
        %v1337 = vadd.f32 %v1066, %v1336
        %v1338 = vpop.f32.mrb[0].mxu0
        %1339 = vmatprep.mubr.f32.mxu0 0.0
        %v1340 = vand.u32 %v482, 4294901760
        %v1341 = vsub.f32 %v482, %v1340
        %1342 = vmatmul.mubr.f32.gmra.mrb[0].mxu0 %v1341
        %v1343 = vpop.f32.mrb[0].mxu0
        %v1344 = vadd.f32 %v1072, %v1343
        %v1345 = vpop.f32.mrb[0].mxu0
        %1346 = vmatprep.mubr.f32.mxu0 0.0
        %v1347 = vand.u32 %v485, 4294901760
        %v1348 = vsub.f32 %v485, %v1347
        %1349 = vmatmul.mubr.f32.gmra.mrb[0].mxu0 %v1348
        %v1350 = vpop.f32.mrb[0].mxu0
        %v1351 = vadd.f32 %v1078, %v1350
        %v1352 = vpop.f32.mrb[0].mxu0
        %1353 = vmatprep.mubr.f32.mxu0 0.0
        %v1354 = vand.u32 %v488, 4294901760
        %v1355 = vsub.f32 %v488, %v1354
        %1356 = vmatmul.mubr.f32.gmra.mrb[0].mxu0 %v1355
        %v1357 = vpop.f32.mrb[0].mxu0
        %v1358 = vadd.f32 %v1084, %v1357
        %v1359 = vpop.f32.mrb[0].mxu0
        %1360 = vmatprep.mubr.f32.mxu0 0.0
        %v1361 = vand.u32 %v491, 4294901760
        %v1362 = vsub.f32 %v491, %v1361
        %1363 = vmatmul.mubr.f32.gmra.mrb[0].mxu0 %v1362
        %v1364 = vpop.f32.mrb[0].mxu0
        %v1365 = vadd.f32 %v1090, %v1364
        %v1366 = vpop.f32.mrb[0].mxu0
        %1367 = vmatprep.mubr.f32.mxu0 0.0
        %v1368 = vand.u32 %v494, 4294901760
        %v1369 = vsub.f32 %v494, %v1368
        %1370 = vmatmul.mubr.f32.gmra.mrb[0].mxu0 %v1369
        %v1371 = vpop.f32.mrb[0].mxu0
        %v1372 = vadd.f32 %v1096, %v1371
        %v1373 = vpop.f32.mrb[0].mxu0
        %1374 = vmatprep.mubr.f32.mxu0 0.0
        %v1375 = vand.u32 %v497, 4294901760
        %v1376 = vsub.f32 %v497, %v1375
        %1377 = vmatmul.mubr.f32.gmra.mrb[0].mxu0 %v1376
        %v1378 = vpop.f32.mrb[0].mxu0
        %v1379 = vadd.f32 %v1102, %v1378
        %v1380 = vpop.f32.mrb[0].mxu0
        %1381 = vmatprep.mubr.f32.mxu0 0.0
        %v1382 = vand.u32 %v500, 4294901760
        %v1383 = vsub.f32 %v500, %v1382
        %1384 = vmatmul.mubr.f32.gmra.mrb[0].mxu0 %v1383
        %v1385 = vpop.f32.mrb[0].mxu0
        %v1386 = vadd.f32 %v1108, %v1385
        %v1387 = vpop.f32.mrb[0].mxu0
        %1388 = vmatprep.mubr.f32.mxu0 0.0
        %v1389 = vand.u32 %v503, 4294901760
        %v1390 = vsub.f32 %v503, %v1389
        %1391 = vmatmul.mubr.f32.gmra.mrb[0].mxu0 %v1390
        %v1392 = vpop.f32.mrb[0].mxu0
        %v1393 = vadd.f32 %v1114, %v1392
        %v1394 = vpop.f32.mrb[0].mxu0
        %1395 = vmatprep.mubr.f32.mxu0 0.0
        %v1396 = vand.u32 %v506, 4294901760
        %v1397 = vsub.f32 %v506, %v1396
        %1398 = vmatmul.mubr.f32.gmra.mrb[0].mxu0 %v1397
        %v1399 = vpop.f32.mrb[0].mxu0
        %v1400 = vadd.f32 %v1120, %v1399
        %v1401 = vpop.f32.mrb[0].mxu0
        %1402 = vmatprep.mubr.f32.mxu0 0.0
        %v1403 = vand.u32 %v509, 4294901760
        %v1404 = vsub.f32 %v509, %v1403
        %1405 = vmatmul.mubr.f32.gmra.mrb[0].mxu0 %v1404
        %v1406 = vpop.f32.mrb[0].mxu0
        %v1407 = vadd.f32 %v1126, %v1406
        %v1408 = vpop.f32.mrb[0].mxu0
        %1409 = vmatprep.mubr.f32.mxu0 0.0
        %v1410 = vand.u32 %v512, 4294901760
        %v1411 = vsub.f32 %v512, %v1410
        %1412 = vmatmul.mubr.f32.gmra.mrb[0].mxu0 %v1411
        %v1413 = vpop.f32.mrb[0].mxu0
        %v1414 = vadd.f32 %v1132, %v1413
        %v1415 = vpop.f32.mrb[0].mxu0
        %1416 = vmatprep.mubr.f32.mxu0 0.0
        %v1417 = vand.u32 %v515, 4294901760
        %v1418 = vsub.f32 %v515, %v1417
        %1419 = vmatmul.mubr.f32.gmra.mrb[0].mxu0 %v1418
        %v1420 = vpop.f32.mrb[0].mxu0
        %v1421 = vadd.f32 %v1138, %v1420
        %v1422 = vpop.f32.mrb[0].mxu0
        %1423 = vmatprep.mubr.f32.mxu0 0.0
        %v1424 = vand.u32 %v518, 4294901760
        %v1425 = vsub.f32 %v518, %v1424
        %1426 = vmatmul.mubr.f32.gmra.mrb[0].mxu0 %v1425
        %v1427 = vpop.f32.mrb[0].mxu0
        %v1428 = vadd.f32 %v1144, %v1427
        %v1429 = vpop.f32.mrb[0].mxu0
        %1430 = vmatprep.mubr.f32.mxu0 0.0
        %v1431 = vand.u32 %v521, 4294901760
        %v1432 = vsub.f32 %v521, %v1431
        %1433 = vmatmul.mubr.f32.gmra.mrb[0].mxu0 %v1432
        %v1434 = vpop.f32.mrb[0].mxu0
        %v1435 = vadd.f32 %v1150, %v1434
        %v1436 = vpop.f32.mrb[0].mxu0
        %1437 = vmatprep.mubr.f32.mxu0 0.0
        %v1438 = vand.u32 %v524, 4294901760
        %v1439 = vsub.f32 %v524, %v1438
        %1440 = vmatmul.mubr.f32.gmra.mrb[0].mxu0 %v1439
        %v1441 = vpop.f32.mrb[0].mxu0
        %v1442 = vadd.f32 %v1156, %v1441
        %v1443 = vpop.f32.mrb[0].mxu0
        %1444 = vmatprep.mubr.f32.mxu0 0.0
        %v1445 = vand.u32 %v527, 4294901760
        %v1446 = vsub.f32 %v527, %v1445
        %1447 = vmatmul.mubr.f32.gmra.mrb[0].mxu0 %v1446
        %v1448 = vpop.f32.mrb[0].mxu0
        %v1449 = vadd.f32 %v1162, %v1448
        %v1450 = vpop.f32.mrb[0].mxu0
        %1451 = vmatprep.mubr.f32.mxu0 0.0
        %v1452 = vand.u32 %v530, 4294901760
        %v1453 = vsub.f32 %v530, %v1452
        %1454 = vmatmul.mubr.f32.gmra.mrb[0].mxu0 %v1453
        %v1455 = vpop.f32.mrb[0].mxu0
        %v1456 = vadd.f32 %v1168, %v1455
        %v1457 = vpop.f32.mrb[0].mxu0
        %1458 = vmatprep.mubr.f32.mxu0 0.0
        %v1459 = vand.u32 %v533, 4294901760
        %v1460 = vsub.f32 %v533, %v1459
        %1461 = vmatmul.mubr.f32.gmra.mrb[0].mxu0 %v1460
        %v1462 = vpop.f32.mrb[0].mxu0
        %v1463 = vadd.f32 %v1174, %v1462
        %v1464 = vpop.f32.mrb[0].mxu0
        %1465 = vmatprep.mubr.f32.mxu0 0.0
        %v1466 = vand.u32 %v536, 4294901760
        %v1467 = vsub.f32 %v536, %v1466
        %1468 = vmatmul.mubr.f32.gmra.mrb[0].mxu0 %v1467
        %v1469 = vpop.f32.mrb[0].mxu0
        %v1470 = vadd.f32 %v1180, %v1469
        %v1471 = vpop.f32.mrb[0].mxu0
        %1472 = vmatprep.mubr.f32.mxu0 0.0
        %v1473 = vand.u32 %v539, 4294901760
        %v1474 = vsub.f32 %v539, %v1473
        %1475 = vmatmul.mubr.f32.gmra.mrb[0].mxu0 %v1474
        %v1476 = vpop.f32.mrb[0].mxu0
        %v1477 = vadd.f32 %v1186, %v1476
        %v1478 = vpop.f32.mrb[0].mxu0
        %1479 = vmatprep.mubr.f32.mxu0 0.0
        %v1480 = vand.u32 %v542, 4294901760
        %v1481 = vsub.f32 %v542, %v1480
        %1482 = vmatmul.mubr.f32.gmra.mrb[0].mxu0 %v1481
        %v1483 = vpop.f32.mrb[0].mxu0
        %v1484 = vadd.f32 %v1192, %v1483
        %v1485 = vpop.f32.mrb[0].mxu0
        %1486 = vmatprep.mubr.f32.mxu0 0.0
        %v1487 = vand.u32 %v545, 4294901760
        %v1488 = vsub.f32 %v545, %v1487
        %1489 = vmatmul.mubr.f32.gmra.mrb[0].mxu0 %v1488
        %v1490 = vpop.f32.mrb[0].mxu0
        %v1491 = vadd.f32 %v1198, %v1490
        %v1492 = vpop.f32.mrb[0].mxu0
        %1493 = vmatprep.mubr.f32.mxu0 0.0
        %v1494 = vand.u32 %v548, 4294901760
        %v1495 = vsub.f32 %v548, %v1494
        %1496 = vmatmul.mubr.f32.gmra.mrb[0].mxu0 %v1495
        %v1497 = vpop.f32.mrb[0].mxu0
        %v1498 = vadd.f32 %v1204, %v1497
        %v1499 = vpop.f32.mrb[0].mxu0
        %1500 = vmatprep.mubr.f32.mxu0 0.0
        %v1501 = vand.u32 %v551, 4294901760
        %v1502 = vsub.f32 %v551, %v1501
        %1503 = vmatmul.mubr.f32.gmra.mrb[0].mxu0 %v1502
        %v1504 = vpop.f32.mrb[0].mxu0
        %v1505 = vadd.f32 %v1210, %v1504
        %v1506 = vpop.f32.mrb[0].mxu0
        %1507 = vmatprep.mubr.f32.mxu0 0.0
        %v1508 = vand.u32 %v554, 4294901760
        %v1509 = vsub.f32 %v554, %v1508
        %1510 = vmatmul.mubr.f32.gmra.mrb[0].mxu0 %v1509
        %v1511 = vpop.f32.mrb[0].mxu0
        %v1512 = vadd.f32 %v1216, %v1511
        %v1513 = vpop.f32.mrb[0].mxu0
        %1514 = vmatprep.mubr.f32.mxu0 0.0
        %v1515 = vand.u32 %v557, 4294901760
        %v1516 = vsub.f32 %v557, %v1515
        %1517 = vmatmul.mubr.f32.gmra.mrb[0].mxu0 %v1516
        %v1518 = vpop.f32.mrb[0].mxu0
        %v1519 = vadd.f32 %v1222, %v1518
        %v1520 = vpop.f32.mrb[0].mxu0
        %1521 = vmatprep.mubr.f32.mxu0 0.0
        %v1522 = vand.u32 %v560, 4294901760
        %v1523 = vsub.f32 %v560, %v1522
        %1524 = vmatmul.mubr.f32.gmra.mrb[0].mxu0 %v1523
        %v1525 = vpop.f32.mrb[0].mxu0
        %v1526 = vadd.f32 %v1228, %v1525
        %v1527 = vpop.f32.mrb[0].mxu0
        %1528 = vmatprep.mubr.f32.mxu0 0.0
        %v1529 = vand.u32 %v563, 4294901760
        %v1530 = vsub.f32 %v563, %v1529
        %1531 = vmatmul.mubr.f32.gmra.mrb[0].mxu0 %v1530
        %v1532 = vpop.f32.mrb[0].mxu0
        %v1533 = vadd.f32 %v1234, %v1532
        %v1534 = vpop.f32.mrb[0].mxu0
        %1535 = vdwg.mxu0
        %1536 = vmatprep.subr.mxu0 0.0
        %v1537 = vand.u32 %v399, 4294901760
        %1538 = vmatpush1.msra.mxu0 %v1537
        %1539 = vmatprep.subr.mxu0 0.0
        %v1540 = vand.u32 %v400, 4294901760
        %1541 = vmatpush1.msra.mxu0 %v1540
        %1542 = vmatprep.subr.mxu0 0.0
        %v1543 = vand.u32 %v401, 4294901760
        %1544 = vmatpush1.msra.mxu0 %v1543
        %1545 = vmatprep.subr.mxu0 0.0
        %v1546 = vand.u32 %v402, 4294901760
        %1547 = vmatpush1.msra.mxu0 %v1546
        %1548 = vmatprep.subr.mxu0 0.0
        %v1549 = vand.u32 %v403, 4294901760
        %1550 = vmatpush1.msra.mxu0 %v1549
        %1551 = vmatprep.subr.mxu0 0.0
        %1552 = vmatpush1.msra.mxu0 0.0
        %1553 = vmatprep.subr.mxu0 0.0
        %1554 = vmatpush1.msra.mxu0 0.0
        %1555 = vmatprep.subr.mxu0 0.0
        %1556 = vmatpush1.msra.mxu0 0.0
        %1557 = vmatprep.subr.mxu0 0.0
        %1558 = vmatpush1.msra.mxu0 0.0
        %1559 = vmatprep.subr.mxu0 0.0
        %1560 = vmatpush1.msra.mxu0 0.0
        %1561 = vmatprep.subr.mxu0 0.0
        %1562 = vmatpush1.msra.mxu0 0.0
        %1563 = vmatprep.subr.mxu0 0.0
        %1564 = vmatpush1.msra.mxu0 0.0
        %1565 = vmatprep.subr.mxu0 0.0
        %1566 = vmatpush1.msra.mxu0 0.0
        %1567 = vmatprep.subr.mxu0 0.0
        %1568 = vmatpush1.msra.mxu0 0.0
        %1569 = vmatprep.subr.mxu0 0.0
        %1570 = vmatpush1.msra.mxu0 0.0
        %1571 = vmatprep.subr.mxu0 0.0
        %1572 = vmatpush1.msra.mxu0 0.0
        %1573 = vmatprep.subr.mxu0 0.0
        %1574 = vmatpush1.msra.mxu0 0.0
        %1575 = vmatprep.subr.mxu0 0.0
        %1576 = vmatpush1.msra.mxu0 0.0
        %1577 = vmatprep.subr.mxu0 0.0
        %1578 = vmatpush1.msra.mxu0 0.0
        %1579 = vmatprep.subr.mxu0 0.0
        %1580 = vmatpush1.msra.mxu0 0.0
        %1581 = vmatprep.subr.mxu0 0.0
        %1582 = vmatpush1.msra.mxu0 0.0
        %1583 = vmatprep.subr.mxu0 0.0
        %1584 = vmatpush1.msra.mxu0 0.0
        %1585 = vmatprep.subr.mxu0 0.0
        %1586 = vmatpush1.msra.mxu0 0.0
        %1587 = vmatprep.subr.mxu0 0.0
        %1588 = vmatpush1.msra.mxu0 0.0
        %1589 = vmatprep.subr.mxu0 0.0
        %1590 = vmatpush1.msra.mxu0 0.0
        %1591 = vmatprep.subr.mxu0 0.0
        %1592 = vmatpush1.msra.mxu0 0.0
        %1593 = vmatprep.subr.mxu0 0.0
        %1594 = vmatpush1.msra.mxu0 0.0
        %1595 = vmatprep.subr.mxu0 0.0
        %1596 = vmatpush1.msra.mxu0 0.0
        %1597 = vmatprep.subr.mxu0 0.0
        %1598 = vmatpush1.msra.mxu0 0.0
        %1599 = vmatprep.subr.mxu0 0.0
        %1600 = vmatpush1.msra.mxu0 0.0
        %1601 = vmatprep.subr.mxu0 0.0
        %1602 = vmatpush1.msra.mxu0 0.0
        %1603 = vmatprep.subr.mxu0 0.0
        %1604 = vmatpush1.msra.mxu0 0.0
        %1605 = vmatprep.mubr.f32.mxu0 0.0
        %v1606 = vand.u32 %v470, 4294901760
        %v1607 = vsub.f32 %v470, %v1606
        %v1608 = vand.u32 %v1607, 4294901760
        %1609 = vmatmul.mubr.f32.gmra.mrb[0].mxu0 %v1608
        %v1610 = vpop.f32.mrb[0].mxu0
        %v1611 = vadd.f32 %v1316, %v1610
        %v1612 = vpop.f32.mrb[0].mxu0
        %1613 = vmatprep.mubr.f32.mxu0 0.0
        %v1614 = vand.u32 %v473, 4294901760
        %v1615 = vsub.f32 %v473, %v1614
        %v1616 = vand.u32 %v1615, 4294901760
        %1617 = vmatmul.mubr.f32.gmra.mrb[0].mxu0 %v1616
        %v1618 = vpop.f32.mrb[0].mxu0
        %v1619 = vadd.f32 %v1323, %v1618
        %v1620 = vpop.f32.mrb[0].mxu0
        %1621 = vmatprep.mubr.f32.mxu0 0.0
        %v1622 = vand.u32 %v476, 4294901760
        %v1623 = vsub.f32 %v476, %v1622
        %v1624 = vand.u32 %v1623, 4294901760
        %1625 = vmatmul.mubr.f32.gmra.mrb[0].mxu0 %v1624
        %v1626 = vpop.f32.mrb[0].mxu0
        %v1627 = vadd.f32 %v1330, %v1626
        %v1628 = vpop.f32.mrb[0].mxu0
        %1629 = vmatprep.mubr.f32.mxu0 0.0
        %v1630 = vand.u32 %v479, 4294901760
        %v1631 = vsub.f32 %v479, %v1630
        %v1632 = vand.u32 %v1631, 4294901760
        %1633 = vmatmul.mubr.f32.gmra.mrb[0].mxu0 %v1632
        %v1634 = vpop.f32.mrb[0].mxu0
        %v1635 = vadd.f32 %v1337, %v1634
        %v1636 = vpop.f32.mrb[0].mxu0
        %1637 = vmatprep.mubr.f32.mxu0 0.0
        %v1638 = vand.u32 %v482, 4294901760
        %v1639 = vsub.f32 %v482, %v1638
        %v1640 = vand.u32 %v1639, 4294901760
        %1641 = vmatmul.mubr.f32.gmra.mrb[0].mxu0 %v1640
        %v1642 = vpop.f32.mrb[0].mxu0
        %v1643 = vadd.f32 %v1344, %v1642
        %v1644 = vpop.f32.mrb[0].mxu0
        %1645 = vmatprep.mubr.f32.mxu0 0.0
        %v1646 = vand.u32 %v485, 4294901760
        %v1647 = vsub.f32 %v485, %v1646
        %v1648 = vand.u32 %v1647, 4294901760
        %1649 = vmatmul.mubr.f32.gmra.mrb[0].mxu0 %v1648
        %v1650 = vpop.f32.mrb[0].mxu0
        %v1651 = vadd.f32 %v1351, %v1650
        %v1652 = vpop.f32.mrb[0].mxu0
        %1653 = vmatprep.mubr.f32.mxu0 0.0
        %v1654 = vand.u32 %v488, 4294901760
        %v1655 = vsub.f32 %v488, %v1654
        %v1656 = vand.u32 %v1655, 4294901760
        %1657 = vmatmul.mubr.f32.gmra.mrb[0].mxu0 %v1656
        %v1658 = vpop.f32.mrb[0].mxu0
        %v1659 = vadd.f32 %v1358, %v1658
        %v1660 = vpop.f32.mrb[0].mxu0
        %1661 = vmatprep.mubr.f32.mxu0 0.0
        %v1662 = vand.u32 %v491, 4294901760
        %v1663 = vsub.f32 %v491, %v1662
        %v1664 = vand.u32 %v1663, 4294901760
        %1665 = vmatmul.mubr.f32.gmra.mrb[0].mxu0 %v1664
        %v1666 = vpop.f32.mrb[0].mxu0
        %v1667 = vadd.f32 %v1365, %v1666
        %v1668 = vpop.f32.mrb[0].mxu0
        %1669 = vmatprep.mubr.f32.mxu0 0.0
        %v1670 = vand.u32 %v494, 4294901760
        %v1671 = vsub.f32 %v494, %v1670
        %v1672 = vand.u32 %v1671, 4294901760
        %1673 = vmatmul.mubr.f32.gmra.mrb[0].mxu0 %v1672
        %v1674 = vpop.f32.mrb[0].mxu0
        %v1675 = vadd.f32 %v1372, %v1674
        %v1676 = vpop.f32.mrb[0].mxu0
        %1677 = vmatprep.mubr.f32.mxu0 0.0
        %v1678 = vand.u32 %v497, 4294901760
        %v1679 = vsub.f32 %v497, %v1678
        %v1680 = vand.u32 %v1679, 4294901760
        %1681 = vmatmul.mubr.f32.gmra.mrb[0].mxu0 %v1680
        %v1682 = vpop.f32.mrb[0].mxu0
        %v1683 = vadd.f32 %v1379, %v1682
        %v1684 = vpop.f32.mrb[0].mxu0
        %1685 = vmatprep.mubr.f32.mxu0 0.0
        %v1686 = vand.u32 %v500, 4294901760
        %v1687 = vsub.f32 %v500, %v1686
        %v1688 = vand.u32 %v1687, 4294901760
        %1689 = vmatmul.mubr.f32.gmra.mrb[0].mxu0 %v1688
        %v1690 = vpop.f32.mrb[0].mxu0
        %v1691 = vadd.f32 %v1386, %v1690
        %v1692 = vpop.f32.mrb[0].mxu0
        %1693 = vmatprep.mubr.f32.mxu0 0.0
        %v1694 = vand.u32 %v503, 4294901760
        %v1695 = vsub.f32 %v503, %v1694
        %v1696 = vand.u32 %v1695, 4294901760
        %1697 = vmatmul.mubr.f32.gmra.mrb[0].mxu0 %v1696
        %v1698 = vpop.f32.mrb[0].mxu0
        %v1699 = vadd.f32 %v1393, %v1698
        %v1700 = vpop.f32.mrb[0].mxu0
        %1701 = vmatprep.mubr.f32.mxu0 0.0
        %v1702 = vand.u32 %v506, 4294901760
        %v1703 = vsub.f32 %v506, %v1702
        %v1704 = vand.u32 %v1703, 4294901760
        %1705 = vmatmul.mubr.f32.gmra.mrb[0].mxu0 %v1704
        %v1706 = vpop.f32.mrb[0].mxu0
        %v1707 = vadd.f32 %v1400, %v1706
        %v1708 = vpop.f32.mrb[0].mxu0
        %1709 = vmatprep.mubr.f32.mxu0 0.0
        %v1710 = vand.u32 %v509, 4294901760
        %v1711 = vsub.f32 %v509, %v1710
        %v1712 = vand.u32 %v1711, 4294901760
        %1713 = vmatmul.mubr.f32.gmra.mrb[0].mxu0 %v1712
        %v1714 = vpop.f32.mrb[0].mxu0
        %v1715 = vadd.f32 %v1407, %v1714
        %v1716 = vpop.f32.mrb[0].mxu0
        %1717 = vmatprep.mubr.f32.mxu0 0.0
        %v1718 = vand.u32 %v512, 4294901760
        %v1719 = vsub.f32 %v512, %v1718
        %v1720 = vand.u32 %v1719, 4294901760
        %1721 = vmatmul.mubr.f32.gmra.mrb[0].mxu0 %v1720
        %v1722 = vpop.f32.mrb[0].mxu0
        %v1723 = vadd.f32 %v1414, %v1722
        %v1724 = vpop.f32.mrb[0].mxu0
        %1725 = vmatprep.mubr.f32.mxu0 0.0
        %v1726 = vand.u32 %v515, 4294901760
        %v1727 = vsub.f32 %v515, %v1726
        %v1728 = vand.u32 %v1727, 4294901760
        %1729 = vmatmul.mubr.f32.gmra.mrb[0].mxu0 %v1728
        %v1730 = vpop.f32.mrb[0].mxu0
        %v1731 = vadd.f32 %v1421, %v1730
        %v1732 = vpop.f32.mrb[0].mxu0
        %1733 = vmatprep.mubr.f32.mxu0 0.0
        %v1734 = vand.u32 %v518, 4294901760
        %v1735 = vsub.f32 %v518, %v1734
        %v1736 = vand.u32 %v1735, 4294901760
        %1737 = vmatmul.mubr.f32.gmra.mrb[0].mxu0 %v1736
        %v1738 = vpop.f32.mrb[0].mxu0
        %v1739 = vadd.f32 %v1428, %v1738
        %v1740 = vpop.f32.mrb[0].mxu0
        %1741 = vmatprep.mubr.f32.mxu0 0.0
        %v1742 = vand.u32 %v521, 4294901760
        %v1743 = vsub.f32 %v521, %v1742
        %v1744 = vand.u32 %v1743, 4294901760
        %1745 = vmatmul.mubr.f32.gmra.mrb[0].mxu0 %v1744
        %v1746 = vpop.f32.mrb[0].mxu0
        %v1747 = vadd.f32 %v1435, %v1746
        %v1748 = vpop.f32.mrb[0].mxu0
        %1749 = vmatprep.mubr.f32.mxu0 0.0
        %v1750 = vand.u32 %v524, 4294901760
        %v1751 = vsub.f32 %v524, %v1750
        %v1752 = vand.u32 %v1751, 4294901760
        %1753 = vmatmul.mubr.f32.gmra.mrb[0].mxu0 %v1752
        %v1754 = vpop.f32.mrb[0].mxu0
        %v1755 = vadd.f32 %v1442, %v1754
        %v1756 = vpop.f32.mrb[0].mxu0
        %1757 = vmatprep.mubr.f32.mxu0 0.0
        %v1758 = vand.u32 %v527, 4294901760
        %v1759 = vsub.f32 %v527, %v1758
        %v1760 = vand.u32 %v1759, 4294901760
        %1761 = vmatmul.mubr.f32.gmra.mrb[0].mxu0 %v1760
        %v1762 = vpop.f32.mrb[0].mxu0
        %v1763 = vadd.f32 %v1449, %v1762
        %v1764 = vpop.f32.mrb[0].mxu0
        %1765 = vmatprep.mubr.f32.mxu0 0.0
        %v1766 = vand.u32 %v530, 4294901760
        %v1767 = vsub.f32 %v530, %v1766
        %v1768 = vand.u32 %v1767, 4294901760
        %1769 = vmatmul.mubr.f32.gmra.mrb[0].mxu0 %v1768
        %v1770 = vpop.f32.mrb[0].mxu0
        %v1771 = vadd.f32 %v1456, %v1770
        %v1772 = vpop.f32.mrb[0].mxu0
        %1773 = vmatprep.mubr.f32.mxu0 0.0
        %v1774 = vand.u32 %v533, 4294901760
        %v1775 = vsub.f32 %v533, %v1774
        %v1776 = vand.u32 %v1775, 4294901760
        %1777 = vmatmul.mubr.f32.gmra.mrb[0].mxu0 %v1776
        %v1778 = vpop.f32.mrb[0].mxu0
        %v1779 = vadd.f32 %v1463, %v1778
        %v1780 = vpop.f32.mrb[0].mxu0
        %1781 = vmatprep.mubr.f32.mxu0 0.0
        %v1782 = vand.u32 %v536, 4294901760
        %v1783 = vsub.f32 %v536, %v1782
        %v1784 = vand.u32 %v1783, 4294901760
        %1785 = vmatmul.mubr.f32.gmra.mrb[0].mxu0 %v1784
        %v1786 = vpop.f32.mrb[0].mxu0
        %v1787 = vadd.f32 %v1470, %v1786
        %v1788 = vpop.f32.mrb[0].mxu0
        %1789 = vmatprep.mubr.f32.mxu0 0.0
        %v1790 = vand.u32 %v539, 4294901760
        %v1791 = vsub.f32 %v539, %v1790
        %v1792 = vand.u32 %v1791, 4294901760
        %1793 = vmatmul.mubr.f32.gmra.mrb[0].mxu0 %v1792
        %v1794 = vpop.f32.mrb[0].mxu0
        %v1795 = vadd.f32 %v1477, %v1794
        %v1796 = vpop.f32.mrb[0].mxu0
        %1797 = vmatprep.mubr.f32.mxu0 0.0
        %v1798 = vand.u32 %v542, 4294901760
        %v1799 = vsub.f32 %v542, %v1798
        %v1800 = vand.u32 %v1799, 4294901760
        %1801 = vmatmul.mubr.f32.gmra.mrb[0].mxu0 %v1800
        %v1802 = vpop.f32.mrb[0].mxu0
        %v1803 = vadd.f32 %v1484, %v1802
        %v1804 = vpop.f32.mrb[0].mxu0
        %1805 = vmatprep.mubr.f32.mxu0 0.0
        %v1806 = vand.u32 %v545, 4294901760
        %v1807 = vsub.f32 %v545, %v1806
        %v1808 = vand.u32 %v1807, 4294901760
        %1809 = vmatmul.mubr.f32.gmra.mrb[0].mxu0 %v1808
        %v1810 = vpop.f32.mrb[0].mxu0
        %v1811 = vadd.f32 %v1491, %v1810
        %v1812 = vpop.f32.mrb[0].mxu0
        %1813 = vmatprep.mubr.f32.mxu0 0.0
        %v1814 = vand.u32 %v548, 4294901760
        %v1815 = vsub.f32 %v548, %v1814
        %v1816 = vand.u32 %v1815, 4294901760
        %1817 = vmatmul.mubr.f32.gmra.mrb[0].mxu0 %v1816
        %v1818 = vpop.f32.mrb[0].mxu0
        %v1819 = vadd.f32 %v1498, %v1818
        %v1820 = vpop.f32.mrb[0].mxu0
        %1821 = vmatprep.mubr.f32.mxu0 0.0
        %v1822 = vand.u32 %v551, 4294901760
        %v1823 = vsub.f32 %v551, %v1822
        %v1824 = vand.u32 %v1823, 4294901760
        %1825 = vmatmul.mubr.f32.gmra.mrb[0].mxu0 %v1824
        %v1826 = vpop.f32.mrb[0].mxu0
        %v1827 = vadd.f32 %v1505, %v1826
        %v1828 = vpop.f32.mrb[0].mxu0
        %1829 = vmatprep.mubr.f32.mxu0 0.0
        %v1830 = vand.u32 %v554, 4294901760
        %v1831 = vsub.f32 %v554, %v1830
        %v1832 = vand.u32 %v1831, 4294901760
        %1833 = vmatmul.mubr.f32.gmra.mrb[0].mxu0 %v1832
        %v1834 = vpop.f32.mrb[0].mxu0
        %v1835 = vadd.f32 %v1512, %v1834
        %v1836 = vpop.f32.mrb[0].mxu0
        %1837 = vmatprep.mubr.f32.mxu0 0.0
        %v1838 = vand.u32 %v557, 4294901760
        %v1839 = vsub.f32 %v557, %v1838
        %v1840 = vand.u32 %v1839, 4294901760
        %1841 = vmatmul.mubr.f32.gmra.mrb[0].mxu0 %v1840
        %v1842 = vpop.f32.mrb[0].mxu0
        %v1843 = vadd.f32 %v1519, %v1842
        %v1844 = vpop.f32.mrb[0].mxu0
        %1845 = vmatprep.mubr.f32.mxu0 0.0
        %v1846 = vand.u32 %v560, 4294901760
        %v1847 = vsub.f32 %v560, %v1846
        %v1848 = vand.u32 %v1847, 4294901760
        %1849 = vmatmul.mubr.f32.gmra.mrb[0].mxu0 %v1848
        %v1850 = vpop.f32.mrb[0].mxu0
        %v1851 = vadd.f32 %v1526, %v1850
        %v1852 = vpop.f32.mrb[0].mxu0
        %1853 = vmatprep.mubr.f32.mxu0 0.0
        %v1854 = vand.u32 %v563, 4294901760
        %v1855 = vsub.f32 %v563, %v1854
        %v1856 = vand.u32 %v1855, 4294901760
        %1857 = vmatmul.mubr.f32.gmra.mrb[0].mxu0 %v1856
        %v1858 = vpop.f32.mrb[0].mxu0
        %v1859 = vadd.f32 %v1533, %v1858
        %v1860 = vpop.f32.mrb[0].mxu0
        %1861 = vdwg.mxu0
        %1862 = vmatprep.subr.mxu0 0.0
        %v1863 = vand.u32 %v399, 4294901760
        %v1864 = vsub.f32 %v399, %v1863
        %v1865 = vand.u32 %v1864, 4294901760
        %1866 = vmatpush1.msra.mxu0 %v1865
        %1867 = vmatprep.subr.mxu0 0.0
        %v1868 = vand.u32 %v400, 4294901760
        %v1869 = vsub.f32 %v400, %v1868
        %v1870 = vand.u32 %v1869, 4294901760
        %1871 = vmatpush1.msra.mxu0 %v1870
        %1872 = vmatprep.subr.mxu0 0.0
        %v1873 = vand.u32 %v401, 4294901760
        %v1874 = vsub.f32 %v401, %v1873
        %v1875 = vand.u32 %v1874, 4294901760
        %1876 = vmatpush1.msra.mxu0 %v1875
        %1877 = vmatprep.subr.mxu0 0.0
        %v1878 = vand.u32 %v402, 4294901760
        %v1879 = vsub.f32 %v402, %v1878
        %v1880 = vand.u32 %v1879, 4294901760
        %1881 = vmatpush1.msra.mxu0 %v1880
        %1882 = vmatprep.subr.mxu0 0.0
        %v1883 = vand.u32 %v403, 4294901760
        %v1884 = vsub.f32 %v403, %v1883
        %v1885 = vand.u32 %v1884, 4294901760
        %1886 = vmatpush1.msra.mxu0 %v1885
        %1887 = vmatprep.subr.mxu0 0.0
        %1888 = vmatpush1.msra.mxu0 0.0
        %1889 = vmatprep.subr.mxu0 0.0
        %1890 = vmatpush1.msra.mxu0 0.0
        %1891 = vmatprep.subr.mxu0 0.0
        %1892 = vmatpush1.msra.mxu0 0.0
        %1893 = vmatprep.subr.mxu0 0.0
        %1894 = vmatpush1.msra.mxu0 0.0
        %1895 = vmatprep.subr.mxu0 0.0
        %1896 = vmatpush1.msra.mxu0 0.0
        %1897 = vmatprep.subr.mxu0 0.0
        %1898 = vmatpush1.msra.mxu0 0.0
        %1899 = vmatprep.subr.mxu0 0.0
        %1900 = vmatpush1.msra.mxu0 0.0
        %1901 = vmatprep.subr.mxu0 0.0
        %1902 = vmatpush1.msra.mxu0 0.0
        %1903 = vmatprep.subr.mxu0 0.0
        %1904 = vmatpush1.msra.mxu0 0.0
        %1905 = vmatprep.subr.mxu0 0.0
        %1906 = vmatpush1.msra.mxu0 0.0
        %1907 = vmatprep.subr.mxu0 0.0
        %1908 = vmatpush1.msra.mxu0 0.0
        %1909 = vmatprep.subr.mxu0 0.0
        %1910 = vmatpush1.msra.mxu0 0.0
        %1911 = vmatprep.subr.mxu0 0.0
        %1912 = vmatpush1.msra.mxu0 0.0
        %1913 = vmatprep.subr.mxu0 0.0
        %1914 = vmatpush1.msra.mxu0 0.0
        %1915 = vmatprep.subr.mxu0 0.0
        %1916 = vmatpush1.msra.mxu0 0.0
        %1917 = vmatprep.subr.mxu0 0.0
        %1918 = vmatpush1.msra.mxu0 0.0
        %1919 = vmatprep.subr.mxu0 0.0
        %1920 = vmatpush1.msra.mxu0 0.0
        %1921 = vmatprep.subr.mxu0 0.0
        %1922 = vmatpush1.msra.mxu0 0.0
        %1923 = vmatprep.subr.mxu0 0.0
        %1924 = vmatpush1.msra.mxu0 0.0
        %1925 = vmatprep.subr.mxu0 0.0
        %1926 = vmatpush1.msra.mxu0 0.0
        %1927 = vmatprep.subr.mxu0 0.0
        %1928 = vmatpush1.msra.mxu0 0.0
        %1929 = vmatprep.subr.mxu0 0.0
        %1930 = vmatpush1.msra.mxu0 0.0
        %1931 = vmatprep.subr.mxu0 0.0
        %1932 = vmatpush1.msra.mxu0 0.0
        %1933 = vmatprep.subr.mxu0 0.0
        %1934 = vmatpush1.msra.mxu0 0.0
        %1935 = vmatprep.subr.mxu0 0.0
        %1936 = vmatpush1.msra.mxu0 0.0
        %1937 = vmatprep.subr.mxu0 0.0
        %1938 = vmatpush1.msra.mxu0 0.0
        %1939 = vmatprep.subr.mxu0 0.0
        %1940 = vmatpush1.msra.mxu0 0.0
        %1941 = vmatprep.mubr.f32.mxu0 0.0
        %v1942 = vand.u32 %v470, 4294901760
        %1943 = vmatmul.mubr.f32.gmra.mrb[0].mxu0 %v1942
        %v1944 = vpop.f32.mrb[0].mxu0
        %v1945 = vadd.f32 %v1611, %v1944
        %v1946 = vpop.f32.mrb[0].mxu0
        %1947 = vmatprep.mubr.f32.mxu0 0.0
        %v1948 = vand.u32 %v473, 4294901760
        %1949 = vmatmul.mubr.f32.gmra.mrb[0].mxu0 %v1948
        %v1950 = vpop.f32.mrb[0].mxu0
        %v1951 = vadd.f32 %v1619, %v1950
        %v1952 = vpop.f32.mrb[0].mxu0
        %1953 = vmatprep.mubr.f32.mxu0 0.0
        %v1954 = vand.u32 %v476, 4294901760
        %1955 = vmatmul.mubr.f32.gmra.mrb[0].mxu0 %v1954
        %v1956 = vpop.f32.mrb[0].mxu0
        %v1957 = vadd.f32 %v1627, %v1956
        %v1958 = vpop.f32.mrb[0].mxu0
        %1959 = vmatprep.mubr.f32.mxu0 0.0
        %v1960 = vand.u32 %v479, 4294901760
        %1961 = vmatmul.mubr.f32.gmra.mrb[0].mxu0 %v1960
        %v1962 = vpop.f32.mrb[0].mxu0
        %v1963 = vadd.f32 %v1635, %v1962
        %v1964 = vpop.f32.mrb[0].mxu0
        %1965 = vmatprep.mubr.f32.mxu0 0.0
        %v1966 = vand.u32 %v482, 4294901760
        %1967 = vmatmul.mubr.f32.gmra.mrb[0].mxu0 %v1966
        %v1968 = vpop.f32.mrb[0].mxu0
        %v1969 = vadd.f32 %v1643, %v1968
        %v1970 = vpop.f32.mrb[0].mxu0
        %1971 = vmatprep.mubr.f32.mxu0 0.0
        %v1972 = vand.u32 %v485, 4294901760
        %1973 = vmatmul.mubr.f32.gmra.mrb[0].mxu0 %v1972
        %v1974 = vpop.f32.mrb[0].mxu0
        %v1975 = vadd.f32 %v1651, %v1974
        %v1976 = vpop.f32.mrb[0].mxu0
        %1977 = vmatprep.mubr.f32.mxu0 0.0
        %v1978 = vand.u32 %v488, 4294901760
        %1979 = vmatmul.mubr.f32.gmra.mrb[0].mxu0 %v1978
        %v1980 = vpop.f32.mrb[0].mxu0
        %v1981 = vadd.f32 %v1659, %v1980
        %v1982 = vpop.f32.mrb[0].mxu0
        %1983 = vmatprep.mubr.f32.mxu0 0.0
        %v1984 = vand.u32 %v491, 4294901760
        %1985 = vmatmul.mubr.f32.gmra.mrb[0].mxu0 %v1984
        %v1986 = vpop.f32.mrb[0].mxu0
        %v1987 = vadd.f32 %v1667, %v1986
        %v1988 = vpop.f32.mrb[0].mxu0
        %1989 = vmatprep.mubr.f32.mxu0 0.0
        %v1990 = vand.u32 %v494, 4294901760
        %1991 = vmatmul.mubr.f32.gmra.mrb[0].mxu0 %v1990
        %v1992 = vpop.f32.mrb[0].mxu0
        %v1993 = vadd.f32 %v1675, %v1992
        %v1994 = vpop.f32.mrb[0].mxu0
        %1995 = vmatprep.mubr.f32.mxu0 0.0
        %v1996 = vand.u32 %v497, 4294901760
        %1997 = vmatmul.mubr.f32.gmra.mrb[0].mxu0 %v1996
        %v1998 = vpop.f32.mrb[0].mxu0
        %v1999 = vadd.f32 %v1683, %v1998
        %v2000 = vpop.f32.mrb[0].mxu0
        %2001 = vmatprep.mubr.f32.mxu0 0.0
        %v2002 = vand.u32 %v500, 4294901760
        %2003 = vmatmul.mubr.f32.gmra.mrb[0].mxu0 %v2002
        %v2004 = vpop.f32.mrb[0].mxu0
        %v2005 = vadd.f32 %v1691, %v2004
        %v2006 = vpop.f32.mrb[0].mxu0
        %2007 = vmatprep.mubr.f32.mxu0 0.0
        %v2008 = vand.u32 %v503, 4294901760
        %2009 = vmatmul.mubr.f32.gmra.mrb[0].mxu0 %v2008
        %v2010 = vpop.f32.mrb[0].mxu0
        %v2011 = vadd.f32 %v1699, %v2010
        %v2012 = vpop.f32.mrb[0].mxu0
        %2013 = vmatprep.mubr.f32.mxu0 0.0
        %v2014 = vand.u32 %v506, 4294901760
        %2015 = vmatmul.mubr.f32.gmra.mrb[0].mxu0 %v2014
        %v2016 = vpop.f32.mrb[0].mxu0
        %v2017 = vadd.f32 %v1707, %v2016
        %v2018 = vpop.f32.mrb[0].mxu0
        %2019 = vmatprep.mubr.f32.mxu0 0.0
        %v2020 = vand.u32 %v509, 4294901760
        %2021 = vmatmul.mubr.f32.gmra.mrb[0].mxu0 %v2020
        %v2022 = vpop.f32.mrb[0].mxu0
        %v2023 = vadd.f32 %v1715, %v2022
        %v2024 = vpop.f32.mrb[0].mxu0
        %2025 = vmatprep.mubr.f32.mxu0 0.0
        %v2026 = vand.u32 %v512, 4294901760
        %2027 = vmatmul.mubr.f32.gmra.mrb[0].mxu0 %v2026
        %v2028 = vpop.f32.mrb[0].mxu0
        %v2029 = vadd.f32 %v1723, %v2028
        %v2030 = vpop.f32.mrb[0].mxu0
        %2031 = vmatprep.mubr.f32.mxu0 0.0
        %v2032 = vand.u32 %v515, 4294901760
        %2033 = vmatmul.mubr.f32.gmra.mrb[0].mxu0 %v2032
        %v2034 = vpop.f32.mrb[0].mxu0
        %v2035 = vadd.f32 %v1731, %v2034
        %v2036 = vpop.f32.mrb[0].mxu0
        %2037 = vmatprep.mubr.f32.mxu0 0.0
        %v2038 = vand.u32 %v518, 4294901760
        %2039 = vmatmul.mubr.f32.gmra.mrb[0].mxu0 %v2038
        %v2040 = vpop.f32.mrb[0].mxu0
        %v2041 = vadd.f32 %v1739, %v2040
        %v2042 = vpop.f32.mrb[0].mxu0
        %2043 = vmatprep.mubr.f32.mxu0 0.0
        %v2044 = vand.u32 %v521, 4294901760
        %2045 = vmatmul.mubr.f32.gmra.mrb[0].mxu0 %v2044
        %v2046 = vpop.f32.mrb[0].mxu0
        %v2047 = vadd.f32 %v1747, %v2046
        %v2048 = vpop.f32.mrb[0].mxu0
        %2049 = vmatprep.mubr.f32.mxu0 0.0
        %v2050 = vand.u32 %v524, 4294901760
        %2051 = vmatmul.mubr.f32.gmra.mrb[0].mxu0 %v2050
        %v2052 = vpop.f32.mrb[0].mxu0
        %v2053 = vadd.f32 %v1755, %v2052
        %v2054 = vpop.f32.mrb[0].mxu0
        %2055 = vmatprep.mubr.f32.mxu0 0.0
        %v2056 = vand.u32 %v527, 4294901760
        %2057 = vmatmul.mubr.f32.gmra.mrb[0].mxu0 %v2056
        %v2058 = vpop.f32.mrb[0].mxu0
        %v2059 = vadd.f32 %v1763, %v2058
        %v2060 = vpop.f32.mrb[0].mxu0
        %2061 = vmatprep.mubr.f32.mxu0 0.0
        %v2062 = vand.u32 %v530, 4294901760
        %2063 = vmatmul.mubr.f32.gmra.mrb[0].mxu0 %v2062
        %v2064 = vpop.f32.mrb[0].mxu0
        %v2065 = vadd.f32 %v1771, %v2064
        %v2066 = vpop.f32.mrb[0].mxu0
        %2067 = vmatprep.mubr.f32.mxu0 0.0
        %v2068 = vand.u32 %v533, 4294901760
        %2069 = vmatmul.mubr.f32.gmra.mrb[0].mxu0 %v2068
        %v2070 = vpop.f32.mrb[0].mxu0
        %v2071 = vadd.f32 %v1779, %v2070
        %v2072 = vpop.f32.mrb[0].mxu0
        %2073 = vmatprep.mubr.f32.mxu0 0.0
        %v2074 = vand.u32 %v536, 4294901760
        %2075 = vmatmul.mubr.f32.gmra.mrb[0].mxu0 %v2074
        %v2076 = vpop.f32.mrb[0].mxu0
        %v2077 = vadd.f32 %v1787, %v2076
        %v2078 = vpop.f32.mrb[0].mxu0
        %2079 = vmatprep.mubr.f32.mxu0 0.0
        %v2080 = vand.u32 %v539, 4294901760
        %2081 = vmatmul.mubr.f32.gmra.mrb[0].mxu0 %v2080
        %v2082 = vpop.f32.mrb[0].mxu0
        %v2083 = vadd.f32 %v1795, %v2082
        %v2084 = vpop.f32.mrb[0].mxu0
        %2085 = vmatprep.mubr.f32.mxu0 0.0
        %v2086 = vand.u32 %v542, 4294901760
        %2087 = vmatmul.mubr.f32.gmra.mrb[0].mxu0 %v2086
        %v2088 = vpop.f32.mrb[0].mxu0
        %v2089 = vadd.f32 %v1803, %v2088
        %v2090 = vpop.f32.mrb[0].mxu0
        %2091 = vmatprep.mubr.f32.mxu0 0.0
        %v2092 = vand.u32 %v545, 4294901760
        %2093 = vmatmul.mubr.f32.gmra.mrb[0].mxu0 %v2092
        %v2094 = vpop.f32.mrb[0].mxu0
        %v2095 = vadd.f32 %v1811, %v2094
        %v2096 = vpop.f32.mrb[0].mxu0
        %2097 = vmatprep.mubr.f32.mxu0 0.0
        %v2098 = vand.u32 %v548, 4294901760
        %2099 = vmatmul.mubr.f32.gmra.mrb[0].mxu0 %v2098
        %v2100 = vpop.f32.mrb[0].mxu0
        %v2101 = vadd.f32 %v1819, %v2100
        %v2102 = vpop.f32.mrb[0].mxu0
        %2103 = vmatprep.mubr.f32.mxu0 0.0
        %v2104 = vand.u32 %v551, 4294901760
        %2105 = vmatmul.mubr.f32.gmra.mrb[0].mxu0 %v2104
        %v2106 = vpop.f32.mrb[0].mxu0
        %v2107 = vadd.f32 %v1827, %v2106
        %v2108 = vpop.f32.mrb[0].mxu0
        %2109 = vmatprep.mubr.f32.mxu0 0.0
        %v2110 = vand.u32 %v554, 4294901760
        %2111 = vmatmul.mubr.f32.gmra.mrb[0].mxu0 %v2110
        %v2112 = vpop.f32.mrb[0].mxu0
        %v2113 = vadd.f32 %v1835, %v2112
        %v2114 = vpop.f32.mrb[0].mxu0
        %2115 = vmatprep.mubr.f32.mxu0 0.0
        %v2116 = vand.u32 %v557, 4294901760
        %2117 = vmatmul.mubr.f32.gmra.mrb[0].mxu0 %v2116
        %v2118 = vpop.f32.mrb[0].mxu0
        %v2119 = vadd.f32 %v1843, %v2118
        %v2120 = vpop.f32.mrb[0].mxu0
        %2121 = vmatprep.mubr.f32.mxu0 0.0
        %v2122 = vand.u32 %v560, 4294901760
        %2123 = vmatmul.mubr.f32.gmra.mrb[0].mxu0 %v2122
        %v2124 = vpop.f32.mrb[0].mxu0
        %v2125 = vadd.f32 %v1851, %v2124
        %v2126 = vpop.f32.mrb[0].mxu0
        %2127 = vmatprep.mubr.f32.mxu0 0.0
        %v2128 = vand.u32 %v563, 4294901760
        %2129 = vmatmul.mubr.f32.gmra.mrb[0].mxu0 %v2128
        %v2130 = vpop.f32.mrb[0].mxu0
        %v2131 = vadd.f32 %v1859, %v2130
        %v2132 = vpop.f32.mrb[0].mxu0
        %2133 = vdwg.mxu0
        %2134 = vmatprep.subr.mxu0 0.0
        %v2135 = vand.u32 %v399, 4294901760
        %2136 = vmatpush1.msra.mxu0 %v2135
        %2137 = vmatprep.subr.mxu0 0.0
        %v2138 = vand.u32 %v400, 4294901760
        %2139 = vmatpush1.msra.mxu0 %v2138
        %2140 = vmatprep.subr.mxu0 0.0
        %v2141 = vand.u32 %v401, 4294901760
        %2142 = vmatpush1.msra.mxu0 %v2141
        %2143 = vmatprep.subr.mxu0 0.0
        %v2144 = vand.u32 %v402, 4294901760
        %2145 = vmatpush1.msra.mxu0 %v2144
        %2146 = vmatprep.subr.mxu0 0.0
        %v2147 = vand.u32 %v403, 4294901760
        %2148 = vmatpush1.msra.mxu0 %v2147
        %2149 = vmatprep.subr.mxu0 0.0
        %2150 = vmatpush1.msra.mxu0 0.0
        %2151 = vmatprep.subr.mxu0 0.0
        %2152 = vmatpush1.msra.mxu0 0.0
        %2153 = vmatprep.subr.mxu0 0.0
        %2154 = vmatpush1.msra.mxu0 0.0
        %2155 = vmatprep.subr.mxu0 0.0
        %2156 = vmatpush1.msra.mxu0 0.0
        %2157 = vmatprep.subr.mxu0 0.0
        %2158 = vmatpush1.msra.mxu0 0.0
        %2159 = vmatprep.subr.mxu0 0.0
        %2160 = vmatpush1.msra.mxu0 0.0
        %2161 = vmatprep.subr.mxu0 0.0
        %2162 = vmatpush1.msra.mxu0 0.0
        %2163 = vmatprep.subr.mxu0 0.0
        %2164 = vmatpush1.msra.mxu0 0.0
        %2165 = vmatprep.subr.mxu0 0.0
        %2166 = vmatpush1.msra.mxu0 0.0
        %2167 = vmatprep.subr.mxu0 0.0
        %2168 = vmatpush1.msra.mxu0 0.0
        %2169 = vmatprep.subr.mxu0 0.0
        %2170 = vmatpush1.msra.mxu0 0.0
        %2171 = vmatprep.subr.mxu0 0.0
        %2172 = vmatpush1.msra.mxu0 0.0
        %2173 = vmatprep.subr.mxu0 0.0
        %2174 = vmatpush1.msra.mxu0 0.0
        %2175 = vmatprep.subr.mxu0 0.0
        %2176 = vmatpush1.msra.mxu0 0.0
        %2177 = vmatprep.subr.mxu0 0.0
        %2178 = vmatpush1.msra.mxu0 0.0
        %2179 = vmatprep.subr.mxu0 0.0
        %2180 = vmatpush1.msra.mxu0 0.0
        %2181 = vmatprep.subr.mxu0 0.0
        %2182 = vmatpush1.msra.mxu0 0.0
        %2183 = vmatprep.subr.mxu0 0.0
        %2184 = vmatpush1.msra.mxu0 0.0
        %2185 = vmatprep.subr.mxu0 0.0
        %2186 = vmatpush1.msra.mxu0 0.0
        %2187 = vmatprep.subr.mxu0 0.0
        %2188 = vmatpush1.msra.mxu0 0.0
        %2189 = vmatprep.subr.mxu0 0.0
        %2190 = vmatpush1.msra.mxu0 0.0
        %2191 = vmatprep.subr.mxu0 0.0
        %2192 = vmatpush1.msra.mxu0 0.0
        %2193 = vmatprep.subr.mxu0 0.0
        %2194 = vmatpush1.msra.mxu0 0.0
        %2195 = vmatprep.subr.mxu0 0.0
        %2196 = vmatpush1.msra.mxu0 0.0
        %2197 = vmatprep.subr.mxu0 0.0
        %2198 = vmatpush1.msra.mxu0 0.0
        %2199 = vmatprep.subr.mxu0 0.0
        %2200 = vmatpush1.msra.mxu0 0.0
        %2201 = vmatprep.subr.mxu0 0.0
        %2202 = vmatpush1.msra.mxu0 0.0
        %2203 = vmatprep.mubr.f32.mxu0 0.0
        %v2204 = vand.u32 %v470, 4294901760
        %2205 = vmatmul.mubr.f32.gmra.mrb[0].mxu0 %v2204
        %v2206 = vpop.f32.mrb[0].mxu0
        %v2207 = vadd.f32 %v1945, %v2206
        %v2208 = vpop.f32.mrb[0].mxu0
        %2209 = vmatprep.mubr.f32.mxu0 0.0
        %v2210 = vand.u32 %v473, 4294901760
        %2211 = vmatmul.mubr.f32.gmra.mrb[0].mxu0 %v2210
        %v2212 = vpop.f32.mrb[0].mxu0
        %v2213 = vadd.f32 %v1951, %v2212
        %v2214 = vpop.f32.mrb[0].mxu0
        %2215 = vmatprep.mubr.f32.mxu0 0.0
        %v2216 = vand.u32 %v476, 4294901760
        %2217 = vmatmul.mubr.f32.gmra.mrb[0].mxu0 %v2216
        %v2218 = vpop.f32.mrb[0].mxu0
        %v2219 = vadd.f32 %v1957, %v2218
        %v2220 = vpop.f32.mrb[0].mxu0
        %2221 = vmatprep.mubr.f32.mxu0 0.0
        %v2222 = vand.u32 %v479, 4294901760
        %2223 = vmatmul.mubr.f32.gmra.mrb[0].mxu0 %v2222
        %v2224 = vpop.f32.mrb[0].mxu0
        %v2225 = vadd.f32 %v1963, %v2224
        %v2226 = vpop.f32.mrb[0].mxu0
        %2227 = vmatprep.mubr.f32.mxu0 0.0
        %v2228 = vand.u32 %v482, 4294901760
        %2229 = vmatmul.mubr.f32.gmra.mrb[0].mxu0 %v2228
        %v2230 = vpop.f32.mrb[0].mxu0
        %v2231 = vadd.f32 %v1969, %v2230
        %v2232 = vpop.f32.mrb[0].mxu0
        %2233 = vmatprep.mubr.f32.mxu0 0.0
        %v2234 = vand.u32 %v485, 4294901760
        %2235 = vmatmul.mubr.f32.gmra.mrb[0].mxu0 %v2234
        %v2236 = vpop.f32.mrb[0].mxu0
        %v2237 = vadd.f32 %v1975, %v2236
        %v2238 = vpop.f32.mrb[0].mxu0
        %2239 = vmatprep.mubr.f32.mxu0 0.0
        %v2240 = vand.u32 %v488, 4294901760
        %2241 = vmatmul.mubr.f32.gmra.mrb[0].mxu0 %v2240
        %v2242 = vpop.f32.mrb[0].mxu0
        %v2243 = vadd.f32 %v1981, %v2242
        %v2244 = vpop.f32.mrb[0].mxu0
        %2245 = vmatprep.mubr.f32.mxu0 0.0
        %v2246 = vand.u32 %v491, 4294901760
        %2247 = vmatmul.mubr.f32.gmra.mrb[0].mxu0 %v2246
        %v2248 = vpop.f32.mrb[0].mxu0
        %v2249 = vadd.f32 %v1987, %v2248
        %v2250 = vpop.f32.mrb[0].mxu0
        %2251 = vmatprep.mubr.f32.mxu0 0.0
        %v2252 = vand.u32 %v494, 4294901760
        %2253 = vmatmul.mubr.f32.gmra.mrb[0].mxu0 %v2252
        %v2254 = vpop.f32.mrb[0].mxu0
        %v2255 = vadd.f32 %v1993, %v2254
        %v2256 = vpop.f32.mrb[0].mxu0
        %2257 = vmatprep.mubr.f32.mxu0 0.0
        %v2258 = vand.u32 %v497, 4294901760
        %2259 = vmatmul.mubr.f32.gmra.mrb[0].mxu0 %v2258
        %v2260 = vpop.f32.mrb[0].mxu0
        %v2261 = vadd.f32 %v1999, %v2260
        %v2262 = vpop.f32.mrb[0].mxu0
        %2263 = vmatprep.mubr.f32.mxu0 0.0
        %v2264 = vand.u32 %v500, 4294901760
        %2265 = vmatmul.mubr.f32.gmra.mrb[0].mxu0 %v2264
        %v2266 = vpop.f32.mrb[0].mxu0
        %v2267 = vadd.f32 %v2005, %v2266
        %v2268 = vpop.f32.mrb[0].mxu0
        %2269 = vmatprep.mubr.f32.mxu0 0.0
        %v2270 = vand.u32 %v503, 4294901760
        %2271 = vmatmul.mubr.f32.gmra.mrb[0].mxu0 %v2270
        %v2272 = vpop.f32.mrb[0].mxu0
        %v2273 = vadd.f32 %v2011, %v2272
        %v2274 = vpop.f32.mrb[0].mxu0
        %2275 = vmatprep.mubr.f32.mxu0 0.0
        %v2276 = vand.u32 %v506, 4294901760
        %2277 = vmatmul.mubr.f32.gmra.mrb[0].mxu0 %v2276
        %v2278 = vpop.f32.mrb[0].mxu0
        %v2279 = vadd.f32 %v2017, %v2278
        %v2280 = vpop.f32.mrb[0].mxu0
        %2281 = vmatprep.mubr.f32.mxu0 0.0
        %v2282 = vand.u32 %v509, 4294901760
        %2283 = vmatmul.mubr.f32.gmra.mrb[0].mxu0 %v2282
        %v2284 = vpop.f32.mrb[0].mxu0
        %v2285 = vadd.f32 %v2023, %v2284
        %v2286 = vpop.f32.mrb[0].mxu0
        %2287 = vmatprep.mubr.f32.mxu0 0.0
        %v2288 = vand.u32 %v512, 4294901760
        %2289 = vmatmul.mubr.f32.gmra.mrb[0].mxu0 %v2288
        %v2290 = vpop.f32.mrb[0].mxu0
        %v2291 = vadd.f32 %v2029, %v2290
        %v2292 = vpop.f32.mrb[0].mxu0
        %2293 = vmatprep.mubr.f32.mxu0 0.0
        %v2294 = vand.u32 %v515, 4294901760
        %2295 = vmatmul.mubr.f32.gmra.mrb[0].mxu0 %v2294
        %v2296 = vpop.f32.mrb[0].mxu0
        %v2297 = vadd.f32 %v2035, %v2296
        %v2298 = vpop.f32.mrb[0].mxu0
        %2299 = vmatprep.mubr.f32.mxu0 0.0
        %v2300 = vand.u32 %v518, 4294901760
        %2301 = vmatmul.mubr.f32.gmra.mrb[0].mxu0 %v2300
        %v2302 = vpop.f32.mrb[0].mxu0
        %v2303 = vadd.f32 %v2041, %v2302
        %v2304 = vpop.f32.mrb[0].mxu0
        %2305 = vmatprep.mubr.f32.mxu0 0.0
        %v2306 = vand.u32 %v521, 4294901760
        %2307 = vmatmul.mubr.f32.gmra.mrb[0].mxu0 %v2306
        %v2308 = vpop.f32.mrb[0].mxu0
        %v2309 = vadd.f32 %v2047, %v2308
        %v2310 = vpop.f32.mrb[0].mxu0
        %2311 = vmatprep.mubr.f32.mxu0 0.0
        %v2312 = vand.u32 %v524, 4294901760
        %2313 = vmatmul.mubr.f32.gmra.mrb[0].mxu0 %v2312
        %v2314 = vpop.f32.mrb[0].mxu0
        %v2315 = vadd.f32 %v2053, %v2314
        %v2316 = vpop.f32.mrb[0].mxu0
        %2317 = vmatprep.mubr.f32.mxu0 0.0
        %v2318 = vand.u32 %v527, 4294901760
        %2319 = vmatmul.mubr.f32.gmra.mrb[0].mxu0 %v2318
        %v2320 = vpop.f32.mrb[0].mxu0
        %v2321 = vadd.f32 %v2059, %v2320
        %v2322 = vpop.f32.mrb[0].mxu0
        %2323 = vmatprep.mubr.f32.mxu0 0.0
        %v2324 = vand.u32 %v530, 4294901760
        %2325 = vmatmul.mubr.f32.gmra.mrb[0].mxu0 %v2324
        %v2326 = vpop.f32.mrb[0].mxu0
        %v2327 = vadd.f32 %v2065, %v2326
        %v2328 = vpop.f32.mrb[0].mxu0
        %2329 = vmatprep.mubr.f32.mxu0 0.0
        %v2330 = vand.u32 %v533, 4294901760
        %2331 = vmatmul.mubr.f32.gmra.mrb[0].mxu0 %v2330
        %v2332 = vpop.f32.mrb[0].mxu0
        %v2333 = vadd.f32 %v2071, %v2332
        %v2334 = vpop.f32.mrb[0].mxu0
        %2335 = vmatprep.mubr.f32.mxu0 0.0
        %v2336 = vand.u32 %v536, 4294901760
        %2337 = vmatmul.mubr.f32.gmra.mrb[0].mxu0 %v2336
        %v2338 = vpop.f32.mrb[0].mxu0
        %v2339 = vadd.f32 %v2077, %v2338
        %v2340 = vpop.f32.mrb[0].mxu0
        %2341 = vmatprep.mubr.f32.mxu0 0.0
        %v2342 = vand.u32 %v539, 4294901760
        %2343 = vmatmul.mubr.f32.gmra.mrb[0].mxu0 %v2342
        %v2344 = vpop.f32.mrb[0].mxu0
        %v2345 = vadd.f32 %v2083, %v2344
        %v2346 = vpop.f32.mrb[0].mxu0
        %2347 = vmatprep.mubr.f32.mxu0 0.0
        %v2348 = vand.u32 %v542, 4294901760
        %2349 = vmatmul.mubr.f32.gmra.mrb[0].mxu0 %v2348
        %v2350 = vpop.f32.mrb[0].mxu0
        %v2351 = vadd.f32 %v2089, %v2350
        %v2352 = vpop.f32.mrb[0].mxu0
        %2353 = vmatprep.mubr.f32.mxu0 0.0
        %v2354 = vand.u32 %v545, 4294901760
        %2355 = vmatmul.mubr.f32.gmra.mrb[0].mxu0 %v2354
        %v2356 = vpop.f32.mrb[0].mxu0
        %v2357 = vadd.f32 %v2095, %v2356
        %v2358 = vpop.f32.mrb[0].mxu0
        %2359 = vmatprep.mubr.f32.mxu0 0.0
        %v2360 = vand.u32 %v548, 4294901760
        %2361 = vmatmul.mubr.f32.gmra.mrb[0].mxu0 %v2360
        %v2362 = vpop.f32.mrb[0].mxu0
        %v2363 = vadd.f32 %v2101, %v2362
        %v2364 = vpop.f32.mrb[0].mxu0
        %2365 = vmatprep.mubr.f32.mxu0 0.0
        %v2366 = vand.u32 %v551, 4294901760
        %2367 = vmatmul.mubr.f32.gmra.mrb[0].mxu0 %v2366
        %v2368 = vpop.f32.mrb[0].mxu0
        %v2369 = vadd.f32 %v2107, %v2368
        %v2370 = vpop.f32.mrb[0].mxu0
        %2371 = vmatprep.mubr.f32.mxu0 0.0
        %v2372 = vand.u32 %v554, 4294901760
        %2373 = vmatmul.mubr.f32.gmra.mrb[0].mxu0 %v2372
        %v2374 = vpop.f32.mrb[0].mxu0
        %v2375 = vadd.f32 %v2113, %v2374
        %v2376 = vpop.f32.mrb[0].mxu0
        %2377 = vmatprep.mubr.f32.mxu0 0.0
        %v2378 = vand.u32 %v557, 4294901760
        %2379 = vmatmul.mubr.f32.gmra.mrb[0].mxu0 %v2378
        %v2380 = vpop.f32.mrb[0].mxu0
        %v2381 = vadd.f32 %v2119, %v2380
        %v2382 = vpop.f32.mrb[0].mxu0
        %2383 = vmatprep.mubr.f32.mxu0 0.0
        %v2384 = vand.u32 %v560, 4294901760
        %2385 = vmatmul.mubr.f32.gmra.mrb[0].mxu0 %v2384
        %v2386 = vpop.f32.mrb[0].mxu0
        %v2387 = vadd.f32 %v2125, %v2386
        %v2388 = vpop.f32.mrb[0].mxu0
        %2389 = vmatprep.mubr.f32.mxu0 0.0
        %v2390 = vand.u32 %v563, 4294901760
        %2391 = vmatmul.mubr.f32.gmra.mrb[0].mxu0 %v2390
        %v2392 = vpop.f32.mrb[0].mxu0
        %v2393 = vadd.f32 %v2131, %v2392
        %v2394 = vpop.f32.mrb[0].mxu0
        %2395 = vdwg.mxu0
        %2396 = vst [vmem:[%s180] sm:$0xff] %v2207
        %2397 = vst [vmem:[%s180 + $0x8] sm:$0xff] %v2213
        %2398 = vst [vmem:[%s180 + $0x10] sm:$0xff] %v2219
        %2399 = vst [vmem:[%s180 + $0x18] sm:$0xff] %v2225
        %2400 = vst [vmem:[%s180 + $0x20] sm:$0xff] %v2231
        %2401 = vst [vmem:[%s180 + $0x28] sm:$0xff] %v2237
        %2402 = vst [vmem:[%s180 + $0x30] sm:$0xff] %v2243
        %2403 = vst [vmem:[%s180 + $0x38] sm:$0xff] %v2249
        %2404 = vst [vmem:[%s180 + $0x40] sm:$0xff] %v2255
        %2405 = vst [vmem:[%s180 + $0x48] sm:$0xff] %v2261
        %2406 = vst [vmem:[%s180 + $0x50] sm:$0xff] %v2267
        %2407 = vst [vmem:[%s180 + $0x58] sm:$0xff] %v2273
        %2408 = vst [vmem:[%s180 + $0x60] sm:$0xff] %v2279
        %2409 = vst [vmem:[%s180 + $0x68] sm:$0xff] %v2285
        %2410 = vst [vmem:[%s180 + $0x70] sm:$0xff] %v2291
        %2411 = vst [vmem:[%s180 + $0x78] sm:$0xff] %v2297
        %2412 = vst [vmem:[%s180 + $0x80] sm:$0xff] %v2303
        %2413 = vst [vmem:[%s180 + $0x88] sm:$0xff] %v2309
        %2414 = vst [vmem:[%s180 + $0x90] sm:$0xff] %v2315
        %2415 = vst [vmem:[%s180 + $0x98] sm:$0xff] %v2321
        %2416 = vst [vmem:[%s180 + $0xa0] sm:$0xff] %v2327
        %2417 = vst [vmem:[%s180 + $0xa8] sm:$0xff] %v2333
        %2418 = vst [vmem:[%s180 + $0xb0] sm:$0xff] %v2339
        %2419 = vst [vmem:[%s180 + $0xb8] sm:$0xff] %v2345
        %2420 = vst [vmem:[%s180 + $0xc0] sm:$0xff] %v2351
        %2421 = vst [vmem:[%s180 + $0xc8] sm:$0xff] %v2357
        %2422 = vst [vmem:[%s180 + $0xd0] sm:$0xff] %v2363
        %2423 = vst [vmem:[%s180 + $0xd8] sm:$0xff] %v2369
        %2424 = vst [vmem:[%s180 + $0xe0] sm:$0xff] %v2375
        %2425 = vst [vmem:[%s180 + $0xe8] sm:$0xff] %v2381
        %2426 = vst [vmem:[%s180 + $0xf0] sm:$0xff] %v2387
        %2427 = vst [vmem:[%s180 + $0xf8] sm:$0xff] %v2393
        %s2428 = sand.u32 %s75, 1
        %s2429 = scalar_lea.sflag [#allocation4], %s2428
        %s2430 = sand.u32 %s75, 1
        %s2431 = smul.addr %s2430, 256
        %s2432 = scalar_lea.vmem [#allocation7], %s2431
        // Predicated region
        $region37: #{tpu_custom_call.1} parent=27 // pred_check
          %p2433 = pneg %p85
        $region38: #{tpu_custom_call.1} parent=27 // pred_check_branch
          %2435 = sbr.rel (%p2433) target = $region40
        $region39: #{tpu_custom_call.1} parent=27 // pred_region
          %s2436 = smul.u32 32, %s20
          %s2437 = ssub.s32 38, %s2436
          %p2438 = scmp.lt.s32.totalorder %s2437, 32
          %s2439 = scalar_select %p2438, %s2437, 32
          %s2440 = smul.u32 128, %s2439
          %s2442 = ssub.s32 4096, %s2440
          %2443 = vsyncadd %s2429, %s2442
          %p2444 = scmp.ne.s32.totalorder 0, %s2440
          %s2445 = smul.addr %s2436, 128
          %s2446 = scalar_lea.hbm %s2, %s2445
          %s2447 = smul.u32 8, %s2439
          %s2448 = sshll.u32 %s2432, 4
          %s2449 = int_to_ptr.vmem [resolvable:$true] %s2448
          %s2450 = sshll.u32 %s2447, 4
          %2454 = dma.vmem_to_hbm [thread:$0]  (%p2444), %s2449, %s2450, %s2446, %s2429, 128, 128, 8
        $region40: #{tpu_custom_call.1} parent=27 // pred_fallthru
          _
      $region28: #{tpu_custom_call.1} parent=5 // pred_fallthru
        _
      %p2455 = scmp.le.s32.totalorder 2, %s15
      // Predicated region
      $region41: #{tpu_custom_call.1} parent=5 // pred_check
        %p2456 = pneg %p2455
      $region42: #{tpu_custom_call.1} parent=5 // pred_check_branch
        %2458 = sbr.rel (%p2456) target = $region44
      $region43: #{tpu_custom_call.1} parent=5 // pred_region
        %s2459 = ssub.s32 %s15, 2
        // Predicated region
        $region45: #{tpu_custom_call.1} parent=43 // pred_check
          %p2460 = pneg %p91
        $region46: #{tpu_custom_call.1} parent=43 // pred_check_branch
          %2462 = sbr.rel (%p2460) target = $region48
        $region47: #{tpu_custom_call.1} parent=43 // pred_region
          %s2463 = sand.u32 %s76, 1
          %s2464 = scalar_lea.sflag [#allocation4], %s2463
          %s2465 = sand.u32 %s76, 1
          %s2466 = smul.addr %s2465, 256
          %s2467 = scalar_lea.vmem [#allocation7], %s2466
          %2468 = dma.done %s2464, 4096
        $region48: #{tpu_custom_call.1} parent=43 // pred_fallthru
          _
      $region44: #{tpu_custom_call.1} parent=5 // pred_fallthru
        _
    $region6: #{tpu_custom_call.1} parent=1 // loop_footer
      %s19 = sadd.s32 1, %s15
    $region7: #{tpu_custom_call.1} parent=1 // loop_footer_branch
      %14 = sbr.rel target = $region3
    $region8: #{tpu_custom_call.1} parent=1 // loop_exit
      _
    %2469 = vsyncpa [#allocation3], 1
    %s2470 = scalar_lea.sflag [#allocation3], 1
    %2471 = vsyncpa %s2470, 1
    %2472 = vsyncpa [#allocation6], 1
    %2473 = vsyncpa [#allocation4], 1
    %s2474 = scalar_lea.sflag [#allocation4], 1
    %2475 = vsyncpa %s2474, 1

</llo_original>
